<compile_context>
chip_gen: v6e
topology: v6e:2x2x1
jax: 0.10.0
libtpu: 0.0.40
codegen_flags: <defaults>
</compile_context>

<pallas_src>
import functools

import jax
import jax.numpy as jnp
from jax.experimental import pallas as pl
from jax.experimental.pallas import tpu as pltpu

VMEM_LIMIT = 40 * 1024 * 1024   # <= ~40 MiB: safe on v7x (64 MiB) and v5e/v6e (128 MiB)
POOL = 4                        # MaxPool1d(4)
KSIZE = 9                       # Conv1d kernel_size
PAD = 4                         # Conv1d padding
NPHASE = POOL + KSIZE - 1       # 12 phase rows in the x12 slab


# --------------------------------------------------------------------------- #
# Fused Conv1d(+folded BN) -> ReLU -> MaxPool1d(4) stage                       #
# --------------------------------------------------------------------------- #

def _conv_bn_relu_pool_kernel(x12_ref, w_ref, b_ref, o_ref, *, cin, bn):
    """One block of `bn` batch samples per grid step.

    x12_ref : (bn, 12*cin, lq) bf16   x12[s, j*cin+ci, m] == x_pad[s, ci, 4*m + j]
    w_ref   : (cout, 9*cin)    bf16   BN-folded conv weight, col = k*cin + ci
    b_ref   : (cout, 1)        f32    BN-folded bias
    o_ref   : (bn, cout, lq)   bf16   pooled output, lq = L // 4
    """
    w = w_ref[...]
    bias = b_ref[...]
    for s in range(bn):                          # unrolled over the batch block
        acc = None
        for p in range(POOL):                    # 4 pool phases
            # Contiguous rows [p*cin, (p+9)*cin) of the phase slab are exactly the
            # im2col patch matrix for pool phase p (taps k=0..8 in weight-col order).
            rhs = x12_ref[s, pl.ds(p * cin, KSIZE * cin), :]
            y = jnp.dot(w, rhs, preferred_element_type=jnp.float32) + bias
            acc = y if acc is None else jnp.maximum(acc, y)      # MaxPool1d(4)
        # relu(max_p y_p) == max_p relu(y_p); single f32->bf16 cast at the end.
        o_ref[s] = jnp.maximum(acc, 0.0).astype(o_ref.dtype)


def _build_phase_slab(x, lq):
    """x: (n, cin, L) -> (n, 12*cin, lq) with x12[n, j*cin+ci, m] = x_pad[n, ci, 4m+j]."""
    n, cin, _ = x.shape
    xp = jnp.pad(x, ((0, 0), (0, 0), (PAD, PAD)))
    slabs = [xp[:, :, j:j + POOL * lq:POOL] for j in range(NPHASE)]   # (n, cin, lq) each
    return jnp.stack(slabs, axis=1).reshape(n, NPHASE * cin, lq)


def conv_bn_relu_pool(x, w2d, b2d, *, bn_max=8):
    """x: (n, cin, L) bf16; w2d: (cout, 9*cin) bf16; b2d: (cout, 1) f32.
    Returns (n_pad, cout, L//4) bf16 in NCL layout; n_pad >= n is a multiple of the
    per-step batch block (callers slice the batch only at the very end)."""
    n, cin, l = x.shape
    cout = w2d.shape[0]
    lq = l // POOL                        # MaxPool1d(4) floor-discards the tail

    bn = n if n <= bn_max else bn_max
    n_pad = ((n + bn - 1) // bn) * bn
    if n_pad != n:
        x = jnp.pad(x, ((0, n_pad - n), (0, 0), (0, 0)))

    x12 = _build_phase_slab(x, lq)        # one HBM pass, ~3x the conv input
    kern = functools.partial(_conv_bn_relu_pool_kernel, cin=cin, bn=bn)
    return pl.pallas_call(
        kern,
        out_shape=jax.ShapeDtypeStruct((n_pad, cout, lq), jnp.bfloat16),
        grid=(n_pad // bn,),
        in_specs=[
            pl.BlockSpec((bn, NPHASE * cin, lq), lambda i: (i, 0, 0)),
            pl.BlockSpec((cout, KSIZE * cin), lambda i: (0, 0)),
            pl.BlockSpec((cout, 1), lambda i: (0, 0)),
        ],
        out_specs=pl.BlockSpec((bn, cout, lq), lambda i: (i, 0, 0)),
        compiler_params=pltpu.CompilerParams(
            dimension_semantics=("parallel",),      # v7x: batch split across 2 TCs
            vmem_limit_bytes=VMEM_LIMIT),
    )(x12, w2d, b2d)


# --------------------------------------------------------------------------- #
# Fused flatten -> fc1 -> ReLU -> fc2  (K tiled over channel groups)           #
# --------------------------------------------------------------------------- #

def _fc_fused_kernel(x_ref, w1_ref, b1_ref, w2_ref, b2_ref, o_ref, acc_ref, *, cg):
    """x_ref  : (m, cg, lq2)  bf16   un-flattened conv2 activations (channel group)
    w1_ref : (cg, lq2, H)  bf16   fc1 weight rows for this channel group
    b1_ref : (1, H)        f32
    w2_ref : (H, ncp)      bf16   fc2 weight, class dim zero-padded to 128 lanes
    b2_ref : (1, ncp)      f32
    o_ref  : (m, ncp)      f32    final logits (padded classes)
    acc_ref: (m, H)        f32    fc1 accumulator (scratch is still needed because
                                  the kernel output holds fc2's result, not fc1's)
    """
    @pl.when(pl.program_id(0) == 0)
    def _init():
        acc_ref[...] = jnp.zeros_like(acc_ref)

    part = jnp.dot(x_ref[:, 0, :], w1_ref[0], preferred_element_type=jnp.float32)
    for j in range(1, cg):
        part += jnp.dot(x_ref[:, j, :], w1_ref[j],
                        preferred_element_type=jnp.float32)
    acc_ref[...] += part

    @pl.when(pl.program_id(0) == pl.num_programs(0) - 1)
    def _finalize():
        h = jnp.maximum(acc_ref[...] + b1_ref[...], 0.0)        # fc1 bias + ReLU
        # TODO(synk): Dropout(0.3) is training-mode; inference => identity.
        y = jnp.dot(h.astype(w2_ref.dtype), w2_ref[...],
                    preferred_element_type=jnp.float32)
        o_ref[...] = y + b2_ref[...]                            # fused fc2


def fc1_relu_fc2(h2, wfc1, bfc1, wfc2, bfc2, *, cg=8):
    """h2: (m, C2, lq2) bf16 (un-flattened); wfc1: (C2*lq2, H) bf16; wfc2: (H, ncls).
    Computes fc2(relu(fc1(flatten(h2)))) with torch-flatten folded into the channel
    K tiling (flatten index = c*lq2 + t == wfc1 row order).  Returns (m, 128) f32;
    the caller slices [:, :ncls]."""
    m, c2, lq2 = h2.shape
    k_total, hidden = wfc1.shape
    assert k_total == c2 * lq2, (h2.shape, wfc1.shape)
    ncls = wfc2.shape[1]
    ncp = 128                               # lane-dense padded class dim
    assert ncls <= ncp

    cg = min(cg, c2)
    while c2 % cg:                          # cg must divide the channel count
        cg -= 1
    nsteps = c2 // cg

    w1r = wfc1.reshape(c2, lq2, hidden)     # free reshape (row = c*lq2 + t)
    b1r = bfc1.reshape(1, hidden).astype(jnp.float32)
    w2p = jnp.zeros((hidden, ncp), wfc2.dtype).at[:, :ncls].set(wfc2)
    b2p = jnp.zeros((1, ncp), jnp.float32).at[0, :ncls].set(bfc2.astype(jnp.float32))

    cost = pl.CostEstimate(
        flops=2 * m * k_total * hidden + 2 * m * hidden * ncp,
        transcendentals=0,
        bytes_accessed=(m * k_total + k_total * hidden + hidden * ncp) * 2
                       + m * ncp * 4)

    kern = functools.partial(_fc_fused_kernel, cg=cg)
    # NOTE(v7x): batch m is tiny here, so there is no profitable second "parallel"
    # grid axis; pipeline_mode=pl.Buffered(3) on the w1 spec is a further v7x-only
    # option if the per-step weight DMA latency shows up in traces.
    return pl.pallas_call(
        kern,
        out_shape=jax.ShapeDtypeStruct((m, ncp), jnp.float32),
        grid=(nsteps,),
        in_specs=[
            pl.BlockSpec((m, cg, lq2), lambda c: (0, c, 0)),
            pl.BlockSpec((cg, lq2, hidden), lambda c: (c, 0, 0)),
            pl.BlockSpec((1, hidden), lambda c: (0, 0)),
            pl.BlockSpec((hidden, ncp), lambda c: (0, 0)),
            pl.BlockSpec((1, ncp), lambda c: (0, 0)),
        ],
        out_specs=pl.BlockSpec((m, ncp), lambda c: (0, 0)),
        scratch_shapes=[pltpu.VMEM((m, hidden), jnp.float32)],
        compiler_params=pltpu.CompilerParams(
            dimension_semantics=("arbitrary",),     # K reduction over channel groups
            vmem_limit_bytes=VMEM_LIMIT),
        cost_estimate=cost,
    )(h2, w1r, b1r, w2p, b2p)


# ------------------------------- parameters -------------------------------- #

def fold_conv_bn(w, b, gamma, beta, mean, var, eps=1e-5):
    """Fold eval-mode BatchNorm1d into the conv.  Torch w: (Cout, Cin, K).
    Returns ((Cout, K*Cin) bf16 weight with col = k*Cin + ci, (Cout, 1) f32 bias)."""
    cout, cin, k = w.shape
    scale = gamma / jnp.sqrt(var + eps)
    w2d = jnp.transpose(w, (0, 2, 1)).reshape(cout, k * cin) * scale[:, None]
    b2d = ((b - mean) * scale + beta).reshape(cout, 1)
    return w2d.astype(jnp.bfloat16), b2d.astype(jnp.float32)


def init_params(key, length, num_classes):
    l2 = (length // 4) // 4                      # after two MaxPool1d(4) (floor)
    fc1_in = 32 * l2                             # real L=44100 -> 32*2756 = 88192
    ks = jax.random.split(key, 12)
    p = {}
    # conv1: Conv1d(1, 16, 9, padding=4) + BatchNorm1d(16)
    w1 = jax.random.normal(ks[0], (16, 1, 9), jnp.float32) * 0.1
    b1 = jax.random.normal(ks[1], (16,), jnp.float32) * 0.05
    g1 = 1.0 + 0.1 * jax.random.normal(ks[2], (16,), jnp.float32)
    be1 = 0.05 * jax.random.normal(ks[3], (16,), jnp.float32)
    m1 = 0.05 * jax.random.normal(ks[4], (16,), jnp.float32)
    v1 = 0.5 + jax.random.uniform(ks[5], (16,), jnp.float32)
    p["w1f"], p["b1f"] = fold_conv_bn(w1, b1, g1, be1, m1, v1)
    # conv2: Conv1d(16, 32, 9, padding=4) + BatchNorm1d(32)
    w2 = jax.random.normal(ks[6], (32, 16, 9), jnp.float32) * 0.05
    b2 = jax.random.normal(ks[7], (32,), jnp.float32) * 0.05
    g2 = 1.0 + 0.1 * jax.random.normal(ks[8], (32,), jnp.float32)
    be2 = 0.05 * jax.random.normal(ks[9], (32,), jnp.float32)
    m2 = jnp.zeros((32,), jnp.float32)
    v2 = jnp.ones((32,), jnp.float32)
    p["w2f"], p["b2f"] = fold_conv_bn(w2, b2, g2, be2, m2, v2)
    # fc1 / fc2 (stored pre-transposed (in, out), bf16 for bandwidth)
    p["wfc1"] = (jax.random.normal(ks[10], (fc1_in, 128), jnp.float32) * 0.02
                 ).astype(jnp.bfloat16)
    p["bfc1"] = jnp.zeros((128,), jnp.float32)
    p["wfc2"] = (jax.random.normal(ks[11], (128, num_classes), jnp.float32) * 0.05
                 ).astype(jnp.bfloat16)
    p["bfc2"] = jnp.zeros((num_classes,), jnp.float32)
    return p


# -------------------------------- forward ---------------------------------- #

def cnn1d_forward(x, params):
    """x: (N, 1, L) float32 (PyTorch Conv1d NCL input).  Returns (N, ncls) f32."""
    n = x.shape[0]
    num_classes = params["wfc2"].shape[1]
    xb = x.astype(jnp.bfloat16)
    # stage 1: conv1 + bn1 + relu + pool(4), fused             -> (n', 16, L/4)
    h1 = conv_bn_relu_pool(xb, params["w1f"], params["b1f"])
    # stage 2: conv2 + bn2 + relu + pool(4), fused             -> (n', 32, L/16)
    h2 = conv_bn_relu_pool(h1, params["w2f"], params["b2f"])
    # flatten + dropout(id) + fc1 + relu + fc2 in ONE kernel; the flatten is folded
    # into the channel-group K tiling, so no host-side relayout of h2.
    out = fc1_relu_fc2(h2, params["wfc1"], params["bfc1"],
                       params["wfc2"], params["bfc2"])
    return out[:n, :num_classes]


# ------------------------------ pure-JAX ref -------------------------------- #

def cnn1d_forward_ref(x, params):
    """f32 reference using the same folded-BN weights (bf16 values cast to f32)."""
    def conv_stage(xs, w2d, b2d):
        n, cin, L = xs.shape
        lq = L // POOL
        xp = jnp.pad(xs, ((0, 0), (0, 0), (PAD, PAD)))
        patches = jnp.stack([xp[:, :, k:k + L] for k in range(KSIZE)], axis=1)
        patches = patches.reshape(n, KSIZE * cin, L)
        y = jnp.einsum("ok,nkl->nol", w2d.astype(jnp.float32), patches) \
            + b2d.reshape(1, -1, 1)
        y = jnp.maximum(y, 0.0)
        return y[:, :, :lq * POOL].reshape(n, -1, lq, POOL).max(axis=-1)

    xf = x.astype(jnp.float32)
    h1 = conv_stage(xf, params["w1f"], params["b1f"])
    h2 = conv_stage(h1, params["w2f"], params["b2f"])
    flat = h2.reshape(x.shape[0], -1)
    h3 = jnp.maximum(flat @ params["wfc1"].astype(jnp.float32) + params["bfc1"], 0.0)
    return h3 @ params["wfc2"].astype(jnp.float32) + params["bfc2"]


if __name__ == "__main__":
    N, L, NUM_CLASSES = 2, 256, 10      # small analog of the 44100-sample waveform
    key = jax.random.PRNGKey(0)
    k_in, k_par = jax.random.split(key)
    x = jax.random.normal(k_in, (N, 1, L), jnp.float32)
    params = init_params(k_par, L, NUM_CLASSES)

    out = jax.block_until_ready(jax.jit(cnn1d_forward)(x, params))
    assert out.shape == (N, NUM_CLASSES), out.shape
    assert bool(jnp.all(jnp.isfinite(out)))

    ref = cnn1d_forward_ref(x, params)
    assert bool(jnp.allclose(out, ref, atol=2e-2, rtol=2e-2)), (
        "max |out-ref| = %f" % float(jnp.max(jnp.abs(out - ref))))
    print("KERNEL_OK")
</pallas_src>

<mosaic_0001>
module attributes {stable_mosaic.version = 11 : i64} {
  func.func @_conv_bn_relu_pool_kernel(%arg0: i32, %arg1: memref<2x12x64xbf16, #tpu.memory_space<vmem>>, %arg2: memref<16x9xbf16, #tpu.memory_space<vmem>>, %arg3: memref<16x1xf32, #tpu.memory_space<vmem>>, %arg4: memref<2x16x64xbf16, #tpu.memory_space<vmem>>) attributes {dimension_semantics = [#tpu.dimension_semantics<parallel>], iteration_bounds = array<i64: 1>, scalar_prefetch = 0 : i64, scratch_operands = 0 : i64, tpu.core_type = #tpu.core_type<tc>, window_params = [{transform_indices = @transform_0, window_bounds = array<i64: 2, 12, 64>}, {pipeline_mode = #tpu.pipeline_mode<synchronous>, transform_indices = @transform_1, window_bounds = array<i64: 16, 9>}, {pipeline_mode = #tpu.pipeline_mode<synchronous>, transform_indices = @transform_2, window_bounds = array<i64: 16, 1>}, {transform_indices = @transform_3, window_bounds = array<i64: 2, 16, 64>}]} {
    %c0 = arith.constant 0 : index
    %c0_0 = arith.constant 0 : index
    %0 = vector.load %arg2[%c0, %c0_0] : memref<16x9xbf16, #tpu.memory_space<vmem>>, vector<16x9xbf16>
    %c0_1 = arith.constant 0 : index
    %c0_2 = arith.constant 0 : index
    %1 = vector.load %arg3[%c0_1, %c0_2] : memref<16x1xf32, #tpu.memory_space<vmem>>, vector<16x1xf32>
    %c0_3 = arith.constant 0 : index
    %c0_4 = arith.constant 0 : index
    %c0_5 = arith.constant 0 : index
    %2 = vector.load %arg1[%c0_3, %c0_4, %c0_5] : memref<2x12x64xbf16, #tpu.memory_space<vmem>>, vector<1x9x64xbf16>
    %3 = vector.shape_cast %2 : vector<1x9x64xbf16> to vector<9x64xbf16>
    %cst = arith.constant dense<0.000000e+00> : vector<16x64xf32>
    %4 = tpu.matmul %0, %3, %cst {dimension_numbers = #tpu.dot_dimension_numbers<[1], [0], [0], [1], [0, 0, 1, 1], [], []>} : vector<16x9xbf16>, vector<9x64xbf16>, vector<16x64xf32> -> vector<16x64xf32>
    %5 = vector.broadcast %1 : vector<16x1xf32> to vector<16x64xf32>
    %6 = arith.addf %4, %5 : vector<16x64xf32>
    %c0_6 = arith.constant 0 : index
    %c1 = arith.constant 1 : index
    %c0_7 = arith.constant 0 : index
    %7 = vector.load %arg1[%c0_6, %c1, %c0_7] : memref<2x12x64xbf16, #tpu.memory_space<vmem>>, vector<1x9x64xbf16>
    %8 = vector.shape_cast %7 : vector<1x9x64xbf16> to vector<9x64xbf16>
    %cst_8 = arith.constant dense<0.000000e+00> : vector<16x64xf32>
    %9 = tpu.matmul %0, %8, %cst_8 {dimension_numbers = #tpu.dot_dimension_numbers<[1], [0], [0], [1], [0, 0, 1, 1], [], []>} : vector<16x9xbf16>, vector<9x64xbf16>, vector<16x64xf32> -> vector<16x64xf32>
    %10 = vector.broadcast %1 : vector<16x1xf32> to vector<16x64xf32>
    %11 = arith.addf %9, %10 : vector<16x64xf32>
    %12 = arith.maximumf %6, %11 : vector<16x64xf32>
    %c0_9 = arith.constant 0 : index
    %c2 = arith.constant 2 : index
    %c0_10 = arith.constant 0 : index
    %13 = vector.load %arg1[%c0_9, %c2, %c0_10] : memref<2x12x64xbf16, #tpu.memory_space<vmem>>, vector<1x9x64xbf16>
    %14 = vector.shape_cast %13 : vector<1x9x64xbf16> to vector<9x64xbf16>
    %cst_11 = arith.constant dense<0.000000e+00> : vector<16x64xf32>
    %15 = tpu.matmul %0, %14, %cst_11 {dimension_numbers = #tpu.dot_dimension_numbers<[1], [0], [0], [1], [0, 0, 1, 1], [], []>} : vector<16x9xbf16>, vector<9x64xbf16>, vector<16x64xf32> -> vector<16x64xf32>
    %16 = vector.broadcast %1 : vector<16x1xf32> to vector<16x64xf32>
    %17 = arith.addf %15, %16 : vector<16x64xf32>
    %18 = arith.maximumf %12, %17 : vector<16x64xf32>
    %c0_12 = arith.constant 0 : index
    %c3 = arith.constant 3 : index
    %c0_13 = arith.constant 0 : index
    %19 = vector.load %arg1[%c0_12, %c3, %c0_13] : memref<2x12x64xbf16, #tpu.memory_space<vmem>>, vector<1x9x64xbf16>
    %20 = vector.shape_cast %19 : vector<1x9x64xbf16> to vector<9x64xbf16>
    %cst_14 = arith.constant dense<0.000000e+00> : vector<16x64xf32>
    %21 = tpu.matmul %0, %20, %cst_14 {dimension_numbers = #tpu.dot_dimension_numbers<[1], [0], [0], [1], [0, 0, 1, 1], [], []>} : vector<16x9xbf16>, vector<9x64xbf16>, vector<16x64xf32> -> vector<16x64xf32>
    %22 = vector.broadcast %1 : vector<16x1xf32> to vector<16x64xf32>
    %23 = arith.addf %21, %22 : vector<16x64xf32>
    %24 = arith.maximumf %18, %23 : vector<16x64xf32>
    %cst_15 = arith.constant 0.000000e+00 : f32
    %25 = vector.broadcast %cst_15 : f32 to vector<16x64xf32>
    %26 = arith.maximumf %24, %25 : vector<16x64xf32>
    %27 = arith.truncf %26 : vector<16x64xf32> to vector<16x64xbf16>
    %c0_16 = arith.constant 0 : index
    %c0_17 = arith.constant 0 : index
    %c0_18 = arith.constant 0 : index
    %28 = vector.load %arg4[%c0_16, %c0_17, %c0_18] : memref<2x16x64xbf16, #tpu.memory_space<vmem>>, vector<1x16x64xbf16>
    %29 = vector.shape_cast %28 : vector<1x16x64xbf16> to vector<16x64xbf16>
    %30 = vector.shape_cast %27 : vector<16x64xbf16> to vector<1x16x64xbf16>
    tpu.vector_store %arg4[%c0_16, %c0_17, %c0_18], %30 {strides = array<i32>} : memref<2x16x64xbf16, #tpu.memory_space<vmem>>, vector<1x16x64xbf16>,
    %c1_19 = arith.constant 1 : index
    %c0_20 = arith.constant 0 : index
    %c0_21 = arith.constant 0 : index
    %31 = vector.load %arg1[%c1_19, %c0_20, %c0_21] : memref<2x12x64xbf16, #tpu.memory_space<vmem>>, vector<1x9x64xbf16>
    %32 = vector.shape_cast %31 : vector<1x9x64xbf16> to vector<9x64xbf16>
    %cst_22 = arith.constant dense<0.000000e+00> : vector<16x64xf32>
    %33 = tpu.matmul %0, %32, %cst_22 {dimension_numbers = #tpu.dot_dimension_numbers<[1], [0], [0], [1], [0, 0, 1, 1], [], []>} : vector<16x9xbf16>, vector<9x64xbf16>, vector<16x64xf32> -> vector<16x64xf32>
    %34 = vector.broadcast %1 : vector<16x1xf32> to vector<16x64xf32>
    %35 = arith.addf %33, %34 : vector<16x64xf32>
    %c1_23 = arith.constant 1 : index
    %c1_24 = arith.constant 1 : index
    %c0_25 = arith.constant 0 : index
    %36 = vector.load %arg1[%c1_23, %c1_24, %c0_25] : memref<2x12x64xbf16, #tpu.memory_space<vmem>>, vector<1x9x64xbf16>
    %37 = vector.shape_cast %36 : vector<1x9x64xbf16> to vector<9x64xbf16>
    %cst_26 = arith.constant dense<0.000000e+00> : vector<16x64xf32>
    %38 = tpu.matmul %0, %37, %cst_26 {dimension_numbers = #tpu.dot_dimension_numbers<[1], [0], [0], [1], [0, 0, 1, 1], [], []>} : vector<16x9xbf16>, vector<9x64xbf16>, vector<16x64xf32> -> vector<16x64xf32>
    %39 = vector.broadcast %1 : vector<16x1xf32> to vector<16x64xf32>
    %40 = arith.addf %38, %39 : vector<16x64xf32>
    %41 = arith.maximumf %35, %40 : vector<16x64xf32>
    %c1_27 = arith.constant 1 : index
    %c2_28 = arith.constant 2 : index
    %c0_29 = arith.constant 0 : index
    %42 = vector.load %arg1[%c1_27, %c2_28, %c0_29] : memref<2x12x64xbf16, #tpu.memory_space<vmem>>, vector<1x9x64xbf16>
    %43 = vector.shape_cast %42 : vector<1x9x64xbf16> to vector<9x64xbf16>
    %cst_30 = arith.constant dense<0.000000e+00> : vector<16x64xf32>
    %44 = tpu.matmul %0, %43, %cst_30 {dimension_numbers = #tpu.dot_dimension_numbers<[1], [0], [0], [1], [0, 0, 1, 1], [], []>} : vector<16x9xbf16>, vector<9x64xbf16>, vector<16x64xf32> -> vector<16x64xf32>
    %45 = vector.broadcast %1 : vector<16x1xf32> to vector<16x64xf32>
    %46 = arith.addf %44, %45 : vector<16x64xf32>
    %47 = arith.maximumf %41, %46 : vector<16x64xf32>
    %c1_31 = arith.constant 1 : index
    %c3_32 = arith.constant 3 : index
    %c0_33 = arith.constant 0 : index
    %48 = vector.load %arg1[%c1_31, %c3_32, %c0_33] : memref<2x12x64xbf16, #tpu.memory_space<vmem>>, vector<1x9x64xbf16>
    %49 = vector.shape_cast %48 : vector<1x9x64xbf16> to vector<9x64xbf16>
    %cst_34 = arith.constant dense<0.000000e+00> : vector<16x64xf32>
    %50 = tpu.matmul %0, %49, %cst_34 {dimension_numbers = #tpu.dot_dimension_numbers<[1], [0], [0], [1], [0, 0, 1, 1], [], []>} : vector<16x9xbf16>, vector<9x64xbf16>, vector<16x64xf32> -> vector<16x64xf32>
    %51 = vector.broadcast %1 : vector<16x1xf32> to vector<16x64xf32>
    %52 = arith.addf %50, %51 : vector<16x64xf32>
    %53 = arith.maximumf %47, %52 : vector<16x64xf32>
    %cst_35 = arith.constant 0.000000e+00 : f32
    %54 = vector.broadcast %cst_35 : f32 to vector<16x64xf32>
    %55 = arith.maximumf %53, %54 : vector<16x64xf32>
    %56 = arith.truncf %55 : vector<16x64xf32> to vector<16x64xbf16>
    %c1_36 = arith.constant 1 : index
    %c0_37 = arith.constant 0 : index
    %c0_38 = arith.constant 0 : index
    %57 = vector.load %arg4[%c1_36, %c0_37, %c0_38] : memref<2x16x64xbf16, #tpu.memory_space<vmem>>, vector<1x16x64xbf16>
    %58 = vector.shape_cast %57 : vector<1x16x64xbf16> to vector<16x64xbf16>
    %59 = vector.shape_cast %56 : vector<16x64xbf16> to vector<1x16x64xbf16>
    tpu.vector_store %arg4[%c1_36, %c0_37, %c0_38], %59 {strides = array<i32>} : memref<2x16x64xbf16, #tpu.memory_space<vmem>>, vector<1x16x64xbf16>,
    return
  }
  func.func @transform_0(%arg0: i32) -> (i32, i32, i32) {
    %c0_i32 = arith.constant 0 : i32
    %c0_i32_0 = arith.constant 0 : i32
    %c0_i32_1 = arith.constant 0 : i32
    return %arg0, %c0_i32, %c0_i32_0 : i32, i32, i32
  }
  func.func @transform_1(%arg0: i32) -> (i32, i32) {
    %c0_i32 = arith.constant 0 : i32
    %c0_i32_0 = arith.constant 0 : i32
    %c0_i32_1 = arith.constant 0 : i32
    return %c0_i32, %c0_i32_0 : i32, i32
  }
  func.func @transform_2(%arg0: i32) -> (i32, i32) {
    %c0_i32 = arith.constant 0 : i32
    %c0_i32_0 = arith.constant 0 : i32
    %c0_i32_1 = arith.constant 0 : i32
    return %c0_i32, %c0_i32_0 : i32, i32
  }
  func.func @transform_3(%arg0: i32) -> (i32, i32, i32) {
    %c0_i32 = arith.constant 0 : i32
    %c0_i32_0 = arith.constant 0 : i32
    %c0_i32_1 = arith.constant 0 : i32
    return %arg0, %c0_i32, %c0_i32_0 : i32, i32, i32
  }
}

module attributes {stable_mosaic.version = 11 : i64} {
  func.func @_conv_bn_relu_pool_kernel(%arg0: i32, %arg1: memref<2x192x16xbf16, #tpu.memory_space<vmem>>, %arg2: memref<32x144xbf16, #tpu.memory_space<vmem>>, %arg3: memref<32x1xf32, #tpu.memory_space<vmem>>, %arg4: memref<2x32x16xbf16, #tpu.memory_space<vmem>>) attributes {dimension_semantics = [#tpu.dimension_semantics<parallel>], iteration_bounds = array<i64: 1>, scalar_prefetch = 0 : i64, scratch_operands = 0 : i64, tpu.core_type = #tpu.core_type<tc>, window_params = [{transform_indices = @transform_0, window_bounds = array<i64: 2, 192, 16>}, {pipeline_mode = #tpu.pipeline_mode<synchronous>, transform_indices = @transform_1, window_bounds = array<i64: 32, 144>}, {pipeline_mode = #tpu.pipeline_mode<synchronous>, transform_indices = @transform_2, window_bounds = array<i64: 32, 1>}, {transform_indices = @transform_3, window_bounds = array<i64: 2, 32, 16>}]} {
    %c0 = arith.constant 0 : index
    %c0_0 = arith.constant 0 : index
    %0 = vector.load %arg2[%c0, %c0_0] : memref<32x144xbf16, #tpu.memory_space<vmem>>, vector<32x144xbf16>
    %c0_1 = arith.constant 0 : index
    %c0_2 = arith.constant 0 : index
    %1 = vector.load %arg3[%c0_1, %c0_2] : memref<32x1xf32, #tpu.memory_space<vmem>>, vector<32x1xf32>
    %c0_3 = arith.constant 0 : index
    %c0_4 = arith.constant 0 : index
    %c0_5 = arith.constant 0 : index
    %2 = vector.load %arg1[%c0_3, %c0_4, %c0_5] : memref<2x192x16xbf16, #tpu.memory_space<vmem>>, vector<1x144x16xbf16>
    %3 = vector.shape_cast %2 : vector<1x144x16xbf16> to vector<144x16xbf16>
    %cst = arith.constant dense<0.000000e+00> : vector<32x16xf32>
    %4 = tpu.matmul %0, %3, %cst {dimension_numbers = #tpu.dot_dimension_numbers<[1], [0], [0], [1], [0, 0, 1, 1], [], []>} : vector<32x144xbf16>, vector<144x16xbf16>, vector<32x16xf32> -> vector<32x16xf32>
    %5 = vector.broadcast %1 : vector<32x1xf32> to vector<32x16xf32>
    %6 = arith.addf %4, %5 : vector<32x16xf32>
    %c0_6 = arith.constant 0 : index
    %c16 = arith.constant 16 : index
    %c0_7 = arith.constant 0 : index
    %7 = vector.load %arg1[%c0_6, %c16, %c0_7] : memref<2x192x16xbf16, #tpu.memory_space<vmem>>, vector<1x144x16xbf16>
    %8 = vector.shape_cast %7 : vector<1x144x16xbf16> to vector<144x16xbf16>
    %cst_8 = arith.constant dense<0.000000e+00> : vector<32x16xf32>
    %9 = tpu.matmul %0, %8, %cst_8 {dimension_numbers = #tpu.dot_dimension_numbers<[1], [0], [0], [1], [0, 0, 1, 1], [], []>} : vector<32x144xbf16>, vector<144x16xbf16>, vector<32x16xf32> -> vector<32x16xf32>
    %10 = vector.broadcast %1 : vector<32x1xf32> to vector<32x16xf32>
    %11 = arith.addf %9, %10 : vector<32x16xf32>
    %12 = arith.maximumf %6, %11 : vector<32x16xf32>
    %c0_9 = arith.constant 0 : index
    %c32 = arith.constant 32 : index
    %c0_10 = arith.constant 0 : index
    %13 = vector.load %arg1[%c0_9, %c32, %c0_10] : memref<2x192x16xbf16, #tpu.memory_space<vmem>>, vector<1x144x16xbf16>
    %14 = vector.shape_cast %13 : vector<1x144x16xbf16> to vector<144x16xbf16>
    %cst_11 = arith.constant dense<0.000000e+00> : vector<32x16xf32>
    %15 = tpu.matmul %0, %14, %cst_11 {dimension_numbers = #tpu.dot_dimension_numbers<[1], [0], [0], [1], [0, 0, 1, 1], [], []>} : vector<32x144xbf16>, vector<144x16xbf16>, vector<32x16xf32> -> vector<32x16xf32>
    %16 = vector.broadcast %1 : vector<32x1xf32> to vector<32x16xf32>
    %17 = arith.addf %15, %16 : vector<32x16xf32>
    %18 = arith.maximumf %12, %17 : vector<32x16xf32>
    %c0_12 = arith.constant 0 : index
    %c48 = arith.constant 48 : index
    %c0_13 = arith.constant 0 : index
    %19 = vector.load %arg1[%c0_12, %c48, %c0_13] : memref<2x192x16xbf16, #tpu.memory_space<vmem>>, vector<1x144x16xbf16>
    %20 = vector.shape_cast %19 : vector<1x144x16xbf16> to vector<144x16xbf16>
    %cst_14 = arith.constant dense<0.000000e+00> : vector<32x16xf32>
    %21 = tpu.matmul %0, %20, %cst_14 {dimension_numbers = #tpu.dot_dimension_numbers<[1], [0], [0], [1], [0, 0, 1, 1], [], []>} : vector<32x144xbf16>, vector<144x16xbf16>, vector<32x16xf32> -> vector<32x16xf32>
    %22 = vector.broadcast %1 : vector<32x1xf32> to vector<32x16xf32>
    %23 = arith.addf %21, %22 : vector<32x16xf32>
    %24 = arith.maximumf %18, %23 : vector<32x16xf32>
    %cst_15 = arith.constant 0.000000e+00 : f32
    %25 = vector.broadcast %cst_15 : f32 to vector<32x16xf32>
    %26 = arith.maximumf %24, %25 : vector<32x16xf32>
    %27 = arith.truncf %26 : vector<32x16xf32> to vector<32x16xbf16>
    %c0_16 = arith.constant 0 : index
    %c0_17 = arith.constant 0 : index
    %c0_18 = arith.constant 0 : index
    %28 = vector.load %arg4[%c0_16, %c0_17, %c0_18] : memref<2x32x16xbf16, #tpu.memory_space<vmem>>, vector<1x32x16xbf16>
    %29 = vector.shape_cast %28 : vector<1x32x16xbf16> to vector<32x16xbf16>
    %30 = vector.shape_cast %27 : vector<32x16xbf16> to vector<1x32x16xbf16>
    tpu.vector_store %arg4[%c0_16, %c0_17, %c0_18], %30 {strides = array<i32>} : memref<2x32x16xbf16, #tpu.memory_space<vmem>>, vector<1x32x16xbf16>,
    %c1 = arith.constant 1 : index
    %c0_19 = arith.constant 0 : index
    %c0_20 = arith.constant 0 : index
    %31 = vector.load %arg1[%c1, %c0_19, %c0_20] : memref<2x192x16xbf16, #tpu.memory_space<vmem>>, vector<1x144x16xbf16>
    %32 = vector.shape_cast %31 : vector<1x144x16xbf16> to vector<144x16xbf16>
    %cst_21 = arith.constant dense<0.000000e+00> : vector<32x16xf32>
    %33 = tpu.matmul %0, %32, %cst_21 {dimension_numbers = #tpu.dot_dimension_numbers<[1], [0], [0], [1], [0, 0, 1, 1], [], []>} : vector<32x144xbf16>, vector<144x16xbf16>, vector<32x16xf32> -> vector<32x16xf32>
    %34 = vector.broadcast %1 : vector<32x1xf32> to vector<32x16xf32>
    %35 = arith.addf %33, %34 : vector<32x16xf32>
    %c1_22 = arith.constant 1 : index
    %c16_23 = arith.constant 16 : index
    %c0_24 = arith.constant 0 : index
    %36 = vector.load %arg1[%c1_22, %c16_23, %c0_24] : memref<2x192x16xbf16, #tpu.memory_space<vmem>>, vector<1x144x16xbf16>
    %37 = vector.shape_cast %36 : vector<1x144x16xbf16> to vector<144x16xbf16>
    %cst_25 = arith.constant dense<0.000000e+00> : vector<32x16xf32>
    %38 = tpu.matmul %0, %37, %cst_25 {dimension_numbers = #tpu.dot_dimension_numbers<[1], [0], [0], [1], [0, 0, 1, 1], [], []>} : vector<32x144xbf16>, vector<144x16xbf16>, vector<32x16xf32> -> vector<32x16xf32>
    %39 = vector.broadcast %1 : vector<32x1xf32> to vector<32x16xf32>
    %40 = arith.addf %38, %39 : vector<32x16xf32>
    %41 = arith.maximumf %35, %40 : vector<32x16xf32>
    %c1_26 = arith.constant 1 : index
    %c32_27 = arith.constant 32 : index
    %c0_28 = arith.constant 0 : index
    %42 = vector.load %arg1[%c1_26, %c32_27, %c0_28] : memref<2x192x16xbf16, #tpu.memory_space<vmem>>, vector<1x144x16xbf16>
    %43 = vector.shape_cast %42 : vector<1x144x16xbf16> to vector<144x16xbf16>
    %cst_29 = arith.constant dense<0.000000e+00> : vector<32x16xf32>
    %44 = tpu.matmul %0, %43, %cst_29 {dimension_numbers = #tpu.dot_dimension_numbers<[1], [0], [0], [1], [0, 0, 1, 1], [], []>} : vector<32x144xbf16>, vector<144x16xbf16>, vector<32x16xf32> -> vector<32x16xf32>
    %45 = vector.broadcast %1 : vector<32x1xf32> to vector<32x16xf32>
    %46 = arith.addf %44, %45 : vector<32x16xf32>
    %47 = arith.maximumf %41, %46 : vector<32x16xf32>
    %c1_30 = arith.constant 1 : index
    %c48_31 = arith.constant 48 : index
    %c0_32 = arith.constant 0 : index
    %48 = vector.load %arg1[%c1_30, %c48_31, %c0_32] : memref<2x192x16xbf16, #tpu.memory_space<vmem>>, vector<1x144x16xbf16>
    %49 = vector.shape_cast %48 : vector<1x144x16xbf16> to vector<144x16xbf16>
    %cst_33 = arith.constant dense<0.000000e+00> : vector<32x16xf32>
    %50 = tpu.matmul %0, %49, %cst_33 {dimension_numbers = #tpu.dot_dimension_numbers<[1], [0], [0], [1], [0, 0, 1, 1], [], []>} : vector<32x144xbf16>, vector<144x16xbf16>, vector<32x16xf32> -> vector<32x16xf32>
    %51 = vector.broadcast %1 : vector<32x1xf32> to vector<32x16xf32>
    %52 = arith.addf %50, %51 : vector<32x16xf32>
    %53 = arith.maximumf %47, %52 : vector<32x16xf32>
    %cst_34 = arith.constant 0.000000e+00 : f32
    %54 = vector.broadcast %cst_34 : f32 to vector<32x16xf32>
    %55 = arith.maximumf %53, %54 : vector<32x16xf32>
    %56 = arith.truncf %55 : vector<32x16xf32> to vector<32x16xbf16>
    %c1_35 = arith.constant 1 : index
    %c0_36 = arith.constant 0 : index
    %c0_37 = arith.constant 0 : index
    %57 = vector.load %arg4[%c1_35, %c0_36, %c0_37] : memref<2x32x16xbf16, #tpu.memory_space<vmem>>, vector<1x32x16xbf16>
    %58 = vector.shape_cast %57 : vector<1x32x16xbf16> to vector<32x16xbf16>
    %59 = vector.shape_cast %56 : vector<32x16xbf16> to vector<1x32x16xbf16>
    tpu.vector_store %arg4[%c1_35, %c0_36, %c0_37], %59 {strides = array<i32>} : memref<2x32x16xbf16, #tpu.memory_space<vmem>>, vector<1x32x16xbf16>,
    return
  }
  func.func @transform_0(%arg0: i32) -> (i32, i32, i32) {
    %c0_i32 = arith.constant 0 : i32
    %c0_i32_0 = arith.constant 0 : i32
    %c0_i32_1 = arith.constant 0 : i32
    return %arg0, %c0_i32, %c0_i32_0 : i32, i32, i32
  }
  func.func @transform_1(%arg0: i32) -> (i32, i32) {
    %c0_i32 = arith.constant 0 : i32
    %c0_i32_0 = arith.constant 0 : i32
    %c0_i32_1 = arith.constant 0 : i32
    return %c0_i32, %c0_i32_0 : i32, i32
  }
  func.func @transform_2(%arg0: i32) -> (i32, i32) {
    %c0_i32 = arith.constant 0 : i32
    %c0_i32_0 = arith.constant 0 : i32
    %c0_i32_1 = arith.constant 0 : i32
    return %c0_i32, %c0_i32_0 : i32, i32
  }
  func.func @transform_3(%arg0: i32) -> (i32, i32, i32) {
    %c0_i32 = arith.constant 0 : i32
    %c0_i32_0 = arith.constant 0 : i32
    %c0_i32_1 = arith.constant 0 : i32
    return %arg0, %c0_i32, %c0_i32_0 : i32, i32, i32
  }
}

module attributes {stable_mosaic.version = 11 : i64} {
  func.func @_fc_fused_kernel(%arg0: i32, %arg1: memref<2x8x16xbf16, #tpu.memory_space<vmem>>, %arg2: memref<8x16x128xbf16, #tpu.memory_space<vmem>>, %arg3: memref<1x128xf32, #tpu.memory_space<vmem>>, %arg4: memref<128x128xbf16, #tpu.memory_space<vmem>>, %arg5: memref<1x128xf32, #tpu.memory_space<vmem>>, %arg6: memref<2x128xf32, #tpu.memory_space<vmem>>, %arg7: memref<2x128xf32, #tpu.memory_space<vmem>>) attributes {dimension_semantics = [#tpu.dimension_semantics<arbitrary>], iteration_bounds = array<i64: 4>, scalar_prefetch = 0 : i64, scratch_operands = 1 : i64, tpu.core_type = #tpu.core_type<tc>, window_params = [{transform_indices = @transform_0, window_bounds = array<i64: 2, 8, 16>}, {transform_indices = @transform_1, window_bounds = array<i64: 8, 16, 128>}, {pipeline_mode = #tpu.pipeline_mode<synchronous>, transform_indices = @transform_2, window_bounds = array<i64: 1, 128>}, {pipeline_mode = #tpu.pipeline_mode<synchronous>, transform_indices = @transform_3, window_bounds = array<i64: 128, 128>}, {pipeline_mode = #tpu.pipeline_mode<synchronous>, transform_indices = @transform_4, window_bounds = array<i64: 1, 128>}, {pipeline_mode = #tpu.pipeline_mode<synchronous>, transform_indices = @transform_5, window_bounds = array<i64: 2, 128>}]} {
    %c0_i32 = arith.constant 0 : i32
    %0 = arith.cmpi eq, %arg0, %c0_i32 : i32
    %1 = arith.extui %0 : i1 to i32
    %c0_i32_0 = arith.constant 0 : i32
    %2 = arith.cmpi ne, %1, %c0_i32_0 : i32
    scf.if %2 {
      %cst_53 = arith.constant 0.000000e+00 : f32
      %56 = vector.broadcast %cst_53 : f32 to vector<2x128xf32>
      %c0_54 = arith.constant 0 : index
      %c0_55 = arith.constant 0 : index
      %57 = vector.load %arg7[%c0_54, %c0_55] : memref<2x128xf32, #tpu.memory_space<vmem>>, vector<2x128xf32>
      tpu.vector_store %arg7[%c0_54, %c0_55], %56 {strides = array<i32>} : memref<2x128xf32, #tpu.memory_space<vmem>>, vector<2x128xf32>,
    } else {
    }
    %c0 = arith.constant 0 : index
    %c0_1 = arith.constant 0 : index
    %c0_2 = arith.constant 0 : index
    %3 = vector.load %arg1[%c0, %c0_1, %c0_2] : memref<2x8x16xbf16, #tpu.memory_space<vmem>>, vector<2x1x16xbf16>
    %4 = vector.shape_cast %3 : vector<2x1x16xbf16> to vector<2x16xbf16>
    %c0_3 = arith.constant 0 : index
    %c0_4 = arith.constant 0 : index
    %c0_5 = arith.constant 0 : index
    %5 = vector.load %arg2[%c0_3, %c0_4, %c0_5] : memref<8x16x128xbf16, #tpu.memory_space<vmem>>, vector<1x16x128xbf16>
    %6 = vector.shape_cast %5 : vector<1x16x128xbf16> to vector<16x128xbf16>
    %cst = arith.constant dense<0.000000e+00> : vector<2x128xf32>
    %7 = tpu.matmul %4, %6, %cst {dimension_numbers = #tpu.dot_dimension_numbers<[1], [0], [0], [1], [0, 0, 1, 1], [], []>} : vector<2x16xbf16>, vector<16x128xbf16>, vector<2x128xf32> -> vector<2x128xf32>
    %c0_6 = arith.constant 0 : index
    %c1 = arith.constant 1 : index
    %c0_7 = arith.constant 0 : index
    %8 = vector.load %arg1[%c0_6, %c1, %c0_7] : memref<2x8x16xbf16, #tpu.memory_space<vmem>>, vector<2x1x16xbf16>
    %9 = vector.shape_cast %8 : vector<2x1x16xbf16> to vector<2x16xbf16>
    %c1_8 = arith.constant 1 : index
    %c0_9 = arith.constant 0 : index
    %c0_10 = arith.constant 0 : index
    %10 = vector.load %arg2[%c1_8, %c0_9, %c0_10] : memref<8x16x128xbf16, #tpu.memory_space<vmem>>, vector<1x16x128xbf16>
    %11 = vector.shape_cast %10 : vector<1x16x128xbf16> to vector<16x128xbf16>
    %cst_11 = arith.constant dense<0.000000e+00> : vector<2x128xf32>
    %12 = tpu.matmul %9, %11, %cst_11 {dimension_numbers = #tpu.dot_dimension_numbers<[1], [0], [0], [1], [0, 0, 1, 1], [], []>} : vector<2x16xbf16>, vector<16x128xbf16>, vector<2x128xf32> -> vector<2x128xf32>
    %13 = arith.addf %7, %12 : vector<2x128xf32>
    %c0_12 = arith.constant 0 : index
    %c2 = arith.constant 2 : index
    %c0_13 = arith.constant 0 : index
    %14 = vector.load %arg1[%c0_12, %c2, %c0_13] : memref<2x8x16xbf16, #tpu.memory_space<vmem>>, vector<2x1x16xbf16>
    %15 = vector.shape_cast %14 : vector<2x1x16xbf16> to vector<2x16xbf16>
    %c2_14 = arith.constant 2 : index
    %c0_15 = arith.constant 0 : index
    %c0_16 = arith.constant 0 : index
    %16 = vector.load %arg2[%c2_14, %c0_15, %c0_16] : memref<8x16x128xbf16, #tpu.memory_space<vmem>>, vector<1x16x128xbf16>
    %17 = vector.shape_cast %16 : vector<1x16x128xbf16> to vector<16x128xbf16>
    %cst_17 = arith.constant dense<0.000000e+00> : vector<2x128xf32>
    %18 = tpu.matmul %15, %17, %cst_17 {dimension_numbers = #tpu.dot_dimension_numbers<[1], [0], [0], [1], [0, 0, 1, 1], [], []>} : vector<2x16xbf16>, vector<16x128xbf16>, vector<2x128xf32> -> vector<2x128xf32>
    %19 = arith.addf %13, %18 : vector<2x128xf32>
    %c0_18 = arith.constant 0 : index
    %c3 = arith.constant 3 : index
    %c0_19 = arith.constant 0 : index
    %20 = vector.load %arg1[%c0_18, %c3, %c0_19] : memref<2x8x16xbf16, #tpu.memory_space<vmem>>, vector<2x1x16xbf16>
    %21 = vector.shape_cast %20 : vector<2x1x16xbf16> to vector<2x16xbf16>
    %c3_20 = arith.constant 3 : index
    %c0_21 = arith.constant 0 : index
    %c0_22 = arith.constant 0 : index
    %22 = vector.load %arg2[%c3_20, %c0_21, %c0_22] : memref<8x16x128xbf16, #tpu.memory_space<vmem>>, vector<1x16x128xbf16>
    %23 = vector.shape_cast %22 : vector<1x16x128xbf16> to vector<16x128xbf16>
    %cst_23 = arith.constant dense<0.000000e+00> : vector<2x128xf32>
    %24 = tpu.matmul %21, %23, %cst_23 {dimension_numbers = #tpu.dot_dimension_numbers<[1], [0], [0], [1], [0, 0, 1, 1], [], []>} : vector<2x16xbf16>, vector<16x128xbf16>, vector<2x128xf32> -> vector<2x128xf32>
    %25 = arith.addf %19, %24 : vector<2x128xf32>
    %c0_24 = arith.constant 0 : index
    %c4 = arith.constant 4 : index
    %c0_25 = arith.constant 0 : index
    %26 = vector.load %arg1[%c0_24, %c4, %c0_25] : memref<2x8x16xbf16, #tpu.memory_space<vmem>>, vector<2x1x16xbf16>
    %27 = vector.shape_cast %26 : vector<2x1x16xbf16> to vector<2x16xbf16>
    %c4_26 = arith.constant 4 : index
    %c0_27 = arith.constant 0 : index
    %c0_28 = arith.constant 0 : index
    %28 = vector.load %arg2[%c4_26, %c0_27, %c0_28] : memref<8x16x128xbf16, #tpu.memory_space<vmem>>, vector<1x16x128xbf16>
    %29 = vector.shape_cast %28 : vector<1x16x128xbf16> to vector<16x128xbf16>
    %cst_29 = arith.constant dense<0.000000e+00> : vector<2x128xf32>
    %30 = tpu.matmul %27, %29, %cst_29 {dimension_numbers = #tpu.dot_dimension_numbers<[1], [0], [0], [1], [0, 0, 1, 1], [], []>} : vector<2x16xbf16>, vector<16x128xbf16>, vector<2x128xf32> -> vector<2x128xf32>
    %31 = arith.addf %25, %30 : vector<2x128xf32>
    %c0_30 = arith.constant 0 : index
    %c5 = arith.constant 5 : index
    %c0_31 = arith.constant 0 : index
    %32 = vector.load %arg1[%c0_30, %c5, %c0_31] : memref<2x8x16xbf16, #tpu.memory_space<vmem>>, vector<2x1x16xbf16>
    %33 = vector.shape_cast %32 : vector<2x1x16xbf16> to vector<2x16xbf16>
    %c5_32 = arith.constant 5 : index
    %c0_33 = arith.constant 0 : index
    %c0_34 = arith.constant 0 : index
    %34 = vector.load %arg2[%c5_32, %c0_33, %c0_34] : memref<8x16x128xbf16, #tpu.memory_space<vmem>>, vector<1x16x128xbf16>
    %35 = vector.shape_cast %34 : vector<1x16x128xbf16> to vector<16x128xbf16>
    %cst_35 = arith.constant dense<0.000000e+00> : vector<2x128xf32>
    %36 = tpu.matmul %33, %35, %cst_35 {dimension_numbers = #tpu.dot_dimension_numbers<[1], [0], [0], [1], [0, 0, 1, 1], [], []>} : vector<2x16xbf16>, vector<16x128xbf16>, vector<2x128xf32> -> vector<2x128xf32>
    %37 = arith.addf %31, %36 : vector<2x128xf32>
    %c0_36 = arith.constant 0 : index
    %c6 = arith.constant 6 : index
    %c0_37 = arith.constant 0 : index
    %38 = vector.load %arg1[%c0_36, %c6, %c0_37] : memref<2x8x16xbf16, #tpu.memory_space<vmem>>, vector<2x1x16xbf16>
    %39 = vector.shape_cast %38 : vector<2x1x16xbf16> to vector<2x16xbf16>
    %c6_38 = arith.constant 6 : index
    %c0_39 = arith.constant 0 : index
    %c0_40 = arith.constant 0 : index
    %40 = vector.load %arg2[%c6_38, %c0_39, %c0_40] : memref<8x16x128xbf16, #tpu.memory_space<vmem>>, vector<1x16x128xbf16>
    %41 = vector.shape_cast %40 : vector<1x16x128xbf16> to vector<16x128xbf16>
    %cst_41 = arith.constant dense<0.000000e+00> : vector<2x128xf32>
    %42 = tpu.matmul %39, %41, %cst_41 {dimension_numbers = #tpu.dot_dimension_numbers<[1], [0], [0], [1], [0, 0, 1, 1], [], []>} : vector<2x16xbf16>, vector<16x128xbf16>, vector<2x128xf32> -> vector<2x128xf32>
    %43 = arith.addf %37, %42 : vector<2x128xf32>
    %c0_42 = arith.constant 0 : index
    %c7 = arith.constant 7 : index
    %c0_43 = arith.constant 0 : index
    %44 = vector.load %arg1[%c0_42, %c7, %c0_43] : memref<2x8x16xbf16, #tpu.memory_space<vmem>>, vector<2x1x16xbf16>
    %45 = vector.shape_cast %44 : vector<2x1x16xbf16> to vector<2x16xbf16>
    %c7_44 = arith.constant 7 : index
    %c0_45 = arith.constant 0 : index
    %c0_46 = arith.constant 0 : index
    %46 = vector.load %arg2[%c7_44, %c0_45, %c0_46] : memref<8x16x128xbf16, #tpu.memory_space<vmem>>, vector<1x16x128xbf16>
    %47 = vector.shape_cast %46 : vector<1x16x128xbf16> to vector<16x128xbf16>
    %cst_47 = arith.constant dense<0.000000e+00> : vector<2x128xf32>
    %48 = tpu.matmul %45, %47, %cst_47 {dimension_numbers = #tpu.dot_dimension_numbers<[1], [0], [0], [1], [0, 0, 1, 1], [], []>} : vector<2x16xbf16>, vector<16x128xbf16>, vector<2x128xf32> -> vector<2x128xf32>
    %49 = arith.addf %43, %48 : vector<2x128xf32>
    %c0_48 = arith.constant 0 : index
    %c0_49 = arith.constant 0 : index
    %50 = vector.load %arg7[%c0_48, %c0_49] : memref<2x128xf32, #tpu.memory_space<vmem>>, vector<2x128xf32>
    %51 = arith.addf %50, %49 : vector<2x128xf32>
    %c0_50 = arith.constant 0 : index
    %c0_51 = arith.constant 0 : index
    %52 = vector.load %arg7[%c0_50, %c0_51] : memref<2x128xf32, #tpu.memory_space<vmem>>, vector<2x128xf32>
    tpu.vector_store %arg7[%c0_50, %c0_51], %51 {strides = array<i32>} : memref<2x128xf32, #tpu.memory_space<vmem>>, vector<2x128xf32>,
    %c3_i32 = arith.constant 3 : i32
    %53 = arith.cmpi eq, %arg0, %c3_i32 : i32
    %54 = arith.extui %53 : i1 to i32
    %c0_i32_52 = arith.constant 0 : i32
    %55 = arith.cmpi ne, %54, %c0_i32_52 : i32
    scf.if %55 {
      %c0_53 = arith.constant 0 : index
      %c0_54 = arith.constant 0 : index
      %56 = vector.load %arg7[%c0_53, %c0_54] : memref<2x128xf32, #tpu.memory_space<vmem>>, vector<2x128xf32>
      %c0_55 = arith.constant 0 : index
      %c0_56 = arith.constant 0 : index
      %57 = vector.load %arg3[%c0_55, %c0_56] : memref<1x128xf32, #tpu.memory_space<vmem>>, vector<1x128xf32>
      %58 = vector.broadcast %57 : vector<1x128xf32> to vector<2x128xf32>
      %59 = arith.addf %56, %58 : vector<2x128xf32>
      %cst_57 = arith.constant 0.000000e+00 : f32
      %60 = vector.broadcast %cst_57 : f32 to vector<2x128xf32>
      %61 = arith.maximumf %59, %60 : vector<2x128xf32>
      %62 = arith.truncf %61 : vector<2x128xf32> to vector<2x128xbf16>
      %c0_58 = arith.constant 0 : index
      %c0_59 = arith.constant 0 : index
      %63 = vector.load %arg4[%c0_58, %c0_59] : memref<128x128xbf16, #tpu.memory_space<vmem>>, vector<128x128xbf16>
      %cst_60 = arith.constant dense<0.000000e+00> : vector<2x128xf32>
      %64 = tpu.matmul %62, %63, %cst_60 {dimension_numbers = #tpu.dot_dimension_numbers<[1], [0], [0], [1], [0, 0, 1, 1], [], []>} : vector<2x128xbf16>, vector<128x128xbf16>, vector<2x128xf32> -> vector<2x128xf32>
      %c0_61 = arith.constant 0 : index
      %c0_62 = arith.constant 0 : index
      %65 = vector.load %arg5[%c0_61, %c0_62] : memref<1x128xf32, #tpu.memory_space<vmem>>, vector<1x128xf32>
      %66 = vector.broadcast %65 : vector<1x128xf32> to vector<2x128xf32>
      %67 = arith.addf %64, %66 : vector<2x128xf32>
      %c0_63 = arith.constant 0 : index
      %c0_64 = arith.constant 0 : index
      %68 = vector.load %arg6[%c0_63, %c0_64] : memref<2x128xf32, #tpu.memory_space<vmem>>, vector<2x128xf32>
      tpu.vector_store %arg6[%c0_63, %c0_64], %67 {strides = array<i32>} : memref<2x128xf32, #tpu.memory_space<vmem>>, vector<2x128xf32>,
    } else {
    }
    return
  }
  func.func @transform_0(%arg0: i32) -> (i32, i32, i32) {
    %c0_i32 = arith.constant 0 : i32
    %c0_i32_0 = arith.constant 0 : i32
    %c0_i32_1 = arith.constant 0 : i32
    return %c0_i32, %arg0, %c0_i32_0 : i32, i32, i32
  }
  func.func @transform_1(%arg0: i32) -> (i32, i32, i32) {
    %c0_i32 = arith.constant 0 : i32
    %c0_i32_0 = arith.constant 0 : i32
    %c0_i32_1 = arith.constant 0 : i32
    return %arg0, %c0_i32, %c0_i32_0 : i32, i32, i32
  }
  func.func @transform_2(%arg0: i32) -> (i32, i32) {
    %c0_i32 = arith.constant 0 : i32
    %c0_i32_0 = arith.constant 0 : i32
    %c0_i32_1 = arith.constant 0 : i32
    return %c0_i32, %c0_i32_0 : i32, i32
  }
  func.func @transform_3(%arg0: i32) -> (i32, i32) {
    %c0_i32 = arith.constant 0 : i32
    %c0_i32_0 = arith.constant 0 : i32
    %c0_i32_1 = arith.constant 0 : i32
    return %c0_i32, %c0_i32_0 : i32, i32
  }
  func.func @transform_4(%arg0: i32) -> (i32, i32) {
    %c0_i32 = arith.constant 0 : i32
    %c0_i32_0 = arith.constant 0 : i32
    %c0_i32_1 = arith.constant 0 : i32
    return %c0_i32, %c0_i32_0 : i32, i32
  }
  func.func @transform_5(%arg0: i32) -> (i32, i32) {
    %c0_i32 = arith.constant 0 : i32
    %c0_i32_0 = arith.constant 0 : i32
    %c0_i32_1 = arith.constant 0 : i32
    return %c0_i32, %c0_i32_0 : i32, i32
  }
}

</mosaic_0001>

<llo_original>
// kernel: cnn1d_forward.3
$region0: #{cnn1d_forward.3}
  #allocation0 [shape = 'u32[]', space=smem, size = 0x4, offset = 0x4, fixed_abs, tag = 'smem constant byte address 0x4 - core index']
  #allocation1 [shape = 'u32[144,128]{1,0:T(1,128)}', space=vmem, size = 0x12000, scoped, tag = 'internal scratch']
  %s0 = inlined_call_operand.vmem [shape: bf16[2,12,64], index: 0, kind: input, shape index: {}]
  %s1 = inlined_call_operand.vmem [shape: bf16[16,9], index: 1, kind: input, shape index: {}]
  %s2 = inlined_call_operand.vmem [shape: f32[16,1], index: 2, kind: input, shape index: {}]
  %s3 = inlined_call_operand.vmem [shape: bf16[2,16,64], index: 3, kind: output, shape index: {}]
  %s4 = sld [smem:[#allocation0]]
  $region22: #{cnn1d_forward.3} parent=0
    _
  %s6 = ssub.s32 1, %s4
  %s7 = scalar_select 0, %s6, %s4
  // Predicated region
  $region2: #{cnn1d_forward.3} parent=0 // pred_check
    _
  $region3: #{cnn1d_forward.3} parent=0 // pred_check_branch
    %9 = sbr.rel (0) target = $region5
  $region4: #{cnn1d_forward.3} parent=0 // pred_region
    _
  $region5: #{cnn1d_forward.3} parent=0 // pred_fallthru
    _
  // Predicated region
  $region6: #{cnn1d_forward.3} parent=0 // pred_check
    _
  $region7: #{cnn1d_forward.3} parent=0 // pred_check_branch
    %11 = sbr.rel (0) target = $region9
  $region8: #{cnn1d_forward.3} parent=0 // pred_region
    _
  $region9: #{cnn1d_forward.3} parent=0 // pred_fallthru
    _
  // Predicated region
  $region10: #{cnn1d_forward.3} parent=0 // pred_check
    _
  $region11: #{cnn1d_forward.3} parent=0 // pred_check_branch
    %13 = sbr.rel (0) target = $region13
  $region12: #{cnn1d_forward.3} parent=0 // pred_region
    _
  $region13: #{cnn1d_forward.3} parent=0 // pred_fallthru
    _
  %v15 = vld [vmem:[%s1] sm:$0xf]
  %v16 = vld [vmem:[%s1 + $0x4] sm:$0xf]
  %v17 = vld [vmem:[%s2] sm:$0xff]
  %v18 = vld [vmem:[%s2 + $0x8] sm:$0xff]
  %v19 = vld [vmem:[%s0] sm:$0xf]
  %v20 = vld [vmem:[%s0 + $0x4] sm:$0x1]
  %22 = vset.pattern.permute.xlu0 0
  %23 = vperm.xlu0 %22, %v17
  %v24 = vpop.permute.xlu0 %23
  %27 = vset.pattern.permute.xlu0 0
  %28 = vperm.xlu0 %27, %v18
  %v29 = vpop.permute.xlu0 %28
  %v33 = vunpack.c.l.b16 %v15
  %v34 = vunpack.c.l.b16 %v16
  %v35 = vpack.c.b16 %v34, %v33
  %v38 = vunpack.c.l.b16 %v19
  %v39 = vunpack.c.l.b16 %v20
  %v40 = vpack.c.b16 %v39, %v38
  %vm41 = vcmask 72704
  %v43 = vsel %vm41, %v35, 0
  %vm45 = vcmask 1043456
  %vm46 = vcmask 1044480
  %v47 = vsel %vm45, 4294967295, 65535
  %v48 = vsel %vm46, %v47, 0
  %v50 = vand.u32 %v40, %v48
  %52 = vmatprep.subr.bf16.mxu0 0
  %53 = vmatpush1.bf16.msra.mxu0 0
  %54 = vmatprep.subr.bf16.mxu0 0
  %55 = vmatpush1.bf16.msra.mxu0 0
  %56 = vmatprep.subr.bf16.mxu0 0
  %57 = vmatpush1.bf16.msra.mxu0 0
  %58 = vmatprep.subr.bf16.mxu0 0
  %59 = vmatpush1.bf16.msra.mxu0 0
  %60 = vmatprep.subr.bf16.mxu0 0
  %61 = vmatpush1.bf16.msra.mxu0 0
  %62 = vmatprep.subr.bf16.mxu0 0
  %63 = vmatpush1.bf16.msra.mxu0 0
  %64 = vmatprep.subr.bf16.mxu0 0
  %65 = vmatpush1.bf16.msra.mxu0 0
  %66 = vmatprep.subr.bf16.mxu0 0
  %67 = vmatpush1.bf16.msra.mxu0 %v50
  %68 = vmatprep.subr.bf16.mxu0 0
  %69 = vmatpush2.bf16.msra.mxu0 0
  %70 = vmatprep.subr.bf16.mxu0 0
  %71 = vmatpush2.bf16.msra.mxu0 0
  %72 = vmatprep.subr.bf16.mxu0 0
  %73 = vmatpush2.bf16.msra.mxu0 0
  %74 = vmatprep.subr.bf16.mxu0 0
  %75 = vmatpush2.bf16.msra.mxu0 0
  %76 = vmatprep.subr.bf16.mxu0 0
  %77 = vmatpush2.bf16.msra.mxu0 0
  %78 = vmatprep.subr.bf16.mxu0 0
  %79 = vmatpush2.bf16.msra.mxu0 0
  %80 = vmatprep.subr.bf16.mxu0 0
  %81 = vmatpush2.bf16.msra.mxu0 0
  %82 = vmatprep.subr.bf16.mxu0 0
  %83 = vmatpush2.bf16.msra.mxu0 0
  %84 = vmatprep.mubr.bf16.mxu0 0
  %85 = vmatmul.mubr.bf16.gmra.mxu0 %v43
  %v86 = vpop.f32.mrf.mxu0
  %v87 = vadd.f32 %v24, %v86
  %v88 = vpop.f32.mrf.mxu0
  %v89 = vpop.f32.mrf.mxu0
  %v90 = vadd.f32 %v29, %v89
  %v91 = vpop.f32.mrf.mxu0
  %92 = vdwg.mxu0
  %v93 = vshrl.u32 %v40, 16
  %v95 = vshll.u32 %v40, 16
  %v97 = vrot.slane %v95, 1
  %v98 = vor.u32 %v93, %v97
  %v100 = vand.u32 %v98, %v48
  %102 = vmatprep.subr.bf16.mxu0 0
  %103 = vmatpush1.bf16.msra.mxu0 0
  %104 = vmatprep.subr.bf16.mxu0 0
  %105 = vmatpush1.bf16.msra.mxu0 0
  %106 = vmatprep.subr.bf16.mxu0 0
  %107 = vmatpush1.bf16.msra.mxu0 0
  %108 = vmatprep.subr.bf16.mxu0 0
  %109 = vmatpush1.bf16.msra.mxu0 0
  %110 = vmatprep.subr.bf16.mxu0 0
  %111 = vmatpush1.bf16.msra.mxu0 0
  %112 = vmatprep.subr.bf16.mxu0 0
  %113 = vmatpush1.bf16.msra.mxu0 0
  %114 = vmatprep.subr.bf16.mxu0 0
  %115 = vmatpush1.bf16.msra.mxu0 0
  %116 = vmatprep.subr.bf16.mxu0 0
  %117 = vmatpush1.bf16.msra.mxu0 %v100
  %118 = vmatprep.subr.bf16.mxu0 0
  %119 = vmatpush2.bf16.msra.mxu0 0
  %120 = vmatprep.subr.bf16.mxu0 0
  %121 = vmatpush2.bf16.msra.mxu0 0
  %122 = vmatprep.subr.bf16.mxu0 0
  %123 = vmatpush2.bf16.msra.mxu0 0
  %124 = vmatprep.subr.bf16.mxu0 0
  %125 = vmatpush2.bf16.msra.mxu0 0
  %126 = vmatprep.subr.bf16.mxu0 0
  %127 = vmatpush2.bf16.msra.mxu0 0
  %128 = vmatprep.subr.bf16.mxu0 0
  %129 = vmatpush2.bf16.msra.mxu0 0
  %130 = vmatprep.subr.bf16.mxu0 0
  %131 = vmatpush2.bf16.msra.mxu0 0
  %132 = vmatprep.subr.bf16.mxu0 0
  %133 = vmatpush2.bf16.msra.mxu0 0
  %134 = vmatprep.mubr.bf16.mxu0 0
  %135 = vmatmul.mubr.bf16.gmra.mxu0 %v43
  %v136 = vpop.f32.mrf.mxu0
  %v137 = vadd.f32 %v24, %v136
  %v138 = vpop.f32.mrf.mxu0
  %v139 = vpop.f32.mrf.mxu0
  %v140 = vadd.f32 %v29, %v139
  %v141 = vpop.f32.mrf.mxu0
  %142 = vdwg.mxu0
  %v143 = vmax.f32 %v87, %v137
  %v144 = vmax.f32 %v90, %v140
  %v145 = vld [vmem:[%s0] sm:$0xe]
  %v146 = vld [vmem:[%s0 + $0x4] sm:$0x3]
  %v149 = vunpack.c.l.b16 %v145
  %v150 = vunpack.c.l.b16 %v146
  %v151 = vpack.c.b16 %v150, %v149
  %v152 = vrot.slane %v151, 1
  %v154 = vand.u32 %v152, %v48
  %156 = vmatprep.subr.bf16.mxu0 0
  %157 = vmatpush1.bf16.msra.mxu0 0
  %158 = vmatprep.subr.bf16.mxu0 0
  %159 = vmatpush1.bf16.msra.mxu0 0
  %160 = vmatprep.subr.bf16.mxu0 0
  %161 = vmatpush1.bf16.msra.mxu0 0
  %162 = vmatprep.subr.bf16.mxu0 0
  %163 = vmatpush1.bf16.msra.mxu0 0
  %164 = vmatprep.subr.bf16.mxu0 0
  %165 = vmatpush1.bf16.msra.mxu0 0
  %166 = vmatprep.subr.bf16.mxu0 0
  %167 = vmatpush1.bf16.msra.mxu0 0
  %168 = vmatprep.subr.bf16.mxu0 0
  %169 = vmatpush1.bf16.msra.mxu0 0
  %170 = vmatprep.subr.bf16.mxu0 0
  %171 = vmatpush1.bf16.msra.mxu0 %v154
  %172 = vmatprep.subr.bf16.mxu0 0
  %173 = vmatpush2.bf16.msra.mxu0 0
  %174 = vmatprep.subr.bf16.mxu0 0
  %175 = vmatpush2.bf16.msra.mxu0 0
  %176 = vmatprep.subr.bf16.mxu0 0
  %177 = vmatpush2.bf16.msra.mxu0 0
  %178 = vmatprep.subr.bf16.mxu0 0
  %179 = vmatpush2.bf16.msra.mxu0 0
  %180 = vmatprep.subr.bf16.mxu0 0
  %181 = vmatpush2.bf16.msra.mxu0 0
  %182 = vmatprep.subr.bf16.mxu0 0
  %183 = vmatpush2.bf16.msra.mxu0 0
  %184 = vmatprep.subr.bf16.mxu0 0
  %185 = vmatpush2.bf16.msra.mxu0 0
  %186 = vmatprep.subr.bf16.mxu0 0
  %187 = vmatpush2.bf16.msra.mxu0 0
  %188 = vmatprep.mubr.bf16.mxu0 0
  %189 = vmatmul.mubr.bf16.gmra.mxu0 %v43
  %v190 = vpop.f32.mrf.mxu0
  %v191 = vadd.f32 %v24, %v190
  %v192 = vpop.f32.mrf.mxu0
  %v193 = vpop.f32.mrf.mxu0
  %v194 = vadd.f32 %v29, %v193
  %v195 = vpop.f32.mrf.mxu0
  %196 = vdwg.mxu0
  %v197 = vmax.f32 %v143, %v191
  %v198 = vmax.f32 %v144, %v194
  %v200 = vshrl.u32 %v151, 16
  %v202 = vrot.slane %v200, 1
  %v203 = vshll.u32 %v151, 16
  %v205 = vrot.slane %v203, 2
  %v206 = vor.u32 %v202, %v205
  %v208 = vand.u32 %v206, %v48
  %210 = vmatprep.subr.bf16.mxu0 0
  %211 = vmatpush1.bf16.msra.mxu0 0
  %212 = vmatprep.subr.bf16.mxu0 0
  %213 = vmatpush1.bf16.msra.mxu0 0
  %214 = vmatprep.subr.bf16.mxu0 0
  %215 = vmatpush1.bf16.msra.mxu0 0
  %216 = vmatprep.subr.bf16.mxu0 0
  %217 = vmatpush1.bf16.msra.mxu0 0
  %218 = vmatprep.subr.bf16.mxu0 0
  %219 = vmatpush1.bf16.msra.mxu0 0
  %220 = vmatprep.subr.bf16.mxu0 0
  %221 = vmatpush1.bf16.msra.mxu0 0
  %222 = vmatprep.subr.bf16.mxu0 0
  %223 = vmatpush1.bf16.msra.mxu0 0
  %224 = vmatprep.subr.bf16.mxu0 0
  %225 = vmatpush1.bf16.msra.mxu0 %v208
  %226 = vmatprep.subr.bf16.mxu0 0
  %227 = vmatpush2.bf16.msra.mxu0 0
  %228 = vmatprep.subr.bf16.mxu0 0
  %229 = vmatpush2.bf16.msra.mxu0 0
  %230 = vmatprep.subr.bf16.mxu0 0
  %231 = vmatpush2.bf16.msra.mxu0 0
  %232 = vmatprep.subr.bf16.mxu0 0
  %233 = vmatpush2.bf16.msra.mxu0 0
  %234 = vmatprep.subr.bf16.mxu0 0
  %235 = vmatpush2.bf16.msra.mxu0 0
  %236 = vmatprep.subr.bf16.mxu0 0
  %237 = vmatpush2.bf16.msra.mxu0 0
  %238 = vmatprep.subr.bf16.mxu0 0
  %239 = vmatpush2.bf16.msra.mxu0 0
  %240 = vmatprep.subr.bf16.mxu0 0
  %241 = vmatpush2.bf16.msra.mxu0 0
  %242 = vmatprep.mubr.bf16.mxu0 0
  %243 = vmatmul.mubr.bf16.gmra.mxu0 %v43
  %v244 = vpop.f32.mrf.mxu0
  %v245 = vadd.f32 %v24, %v244
  %v246 = vpop.f32.mrf.mxu0
  %v247 = vpop.f32.mrf.mxu0
  %v248 = vadd.f32 %v29, %v247
  %v249 = vpop.f32.mrf.mxu0
  %250 = vdwg.mxu0
  %v251 = vmax.f32 %v197, %v245
  %v252 = vmax.f32 %v198, %v248
  %v253 = vmax.f32 %v251, 0.0
  %v254 = vmax.f32 %v252, 0.0
  %v255 = vpack.c.bf16 %v254, %v253
  %v257 = vunpack.c.l.b16 %v255
  %v258 = vunpack.c.h.b16 %v255
  %v259 = vpack.c.b16 %v257, %v257
  %v260 = vpack.c.b16 %v258, %v258
  %vm263 = vcmask 519168
  %264 = vst.msk [vmem:[%s3] sm:$0xf] %vm263, %v259
  %265 = vst.msk [vmem:[%s3 + $0x4] sm:$0xf] %vm263, %v260
  %s266 = scalar_lea.vmem %s0, 8
  %v267 = vld [vmem:[%s266] sm:$0xf]
  %v268 = vld [vmem:[%s266 + $0x4] sm:$0x1]
  %v271 = vunpack.c.l.b16 %v267
  %v272 = vunpack.c.l.b16 %v268
  %v273 = vpack.c.b16 %v272, %v271
  %v275 = vand.u32 %v273, %v48
  %277 = vmatprep.subr.bf16.mxu0 0
  %278 = vmatpush1.bf16.msra.mxu0 0
  %279 = vmatprep.subr.bf16.mxu0 0
  %280 = vmatpush1.bf16.msra.mxu0 0
  %281 = vmatprep.subr.bf16.mxu0 0
  %282 = vmatpush1.bf16.msra.mxu0 0
  %283 = vmatprep.subr.bf16.mxu0 0
  %284 = vmatpush1.bf16.msra.mxu0 0
  %285 = vmatprep.subr.bf16.mxu0 0
  %286 = vmatpush1.bf16.msra.mxu0 0
  %287 = vmatprep.subr.bf16.mxu0 0
  %288 = vmatpush1.bf16.msra.mxu0 0
  %289 = vmatprep.subr.bf16.mxu0 0
  %290 = vmatpush1.bf16.msra.mxu0 0
  %291 = vmatprep.subr.bf16.mxu0 0
  %292 = vmatpush1.bf16.msra.mxu0 %v275
  %293 = vmatprep.subr.bf16.mxu0 0
  %294 = vmatpush2.bf16.msra.mxu0 0
  %295 = vmatprep.subr.bf16.mxu0 0
  %296 = vmatpush2.bf16.msra.mxu0 0
  %297 = vmatprep.subr.bf16.mxu0 0
  %298 = vmatpush2.bf16.msra.mxu0 0
  %299 = vmatprep.subr.bf16.mxu0 0
  %300 = vmatpush2.bf16.msra.mxu0 0
  %301 = vmatprep.subr.bf16.mxu0 0
  %302 = vmatpush2.bf16.msra.mxu0 0
  %303 = vmatprep.subr.bf16.mxu0 0
  %304 = vmatpush2.bf16.msra.mxu0 0
  %305 = vmatprep.subr.bf16.mxu0 0
  %306 = vmatpush2.bf16.msra.mxu0 0
  %307 = vmatprep.subr.bf16.mxu0 0
  %308 = vmatpush2.bf16.msra.mxu0 0
  %309 = vmatprep.mubr.bf16.mxu0 0
  %310 = vmatmul.mubr.bf16.gmra.mxu0 %v43
  %v311 = vpop.f32.mrf.mxu0
  %v312 = vadd.f32 %v24, %v311
  %v313 = vpop.f32.mrf.mxu0
  %v314 = vpop.f32.mrf.mxu0
  %v315 = vadd.f32 %v29, %v314
  %v316 = vpop.f32.mrf.mxu0
  %317 = vdwg.mxu0
  %v318 = vshrl.u32 %v273, 16
  %v320 = vshll.u32 %v273, 16
  %v322 = vrot.slane %v320, 1
  %v323 = vor.u32 %v318, %v322
  %v325 = vand.u32 %v323, %v48
  %327 = vmatprep.subr.bf16.mxu0 0
  %328 = vmatpush1.bf16.msra.mxu0 0
  %329 = vmatprep.subr.bf16.mxu0 0
  %330 = vmatpush1.bf16.msra.mxu0 0
  %331 = vmatprep.subr.bf16.mxu0 0
  %332 = vmatpush1.bf16.msra.mxu0 0
  %333 = vmatprep.subr.bf16.mxu0 0
  %334 = vmatpush1.bf16.msra.mxu0 0
  %335 = vmatprep.subr.bf16.mxu0 0
  %336 = vmatpush1.bf16.msra.mxu0 0
  %337 = vmatprep.subr.bf16.mxu0 0
  %338 = vmatpush1.bf16.msra.mxu0 0
  %339 = vmatprep.subr.bf16.mxu0 0
  %340 = vmatpush1.bf16.msra.mxu0 0
  %341 = vmatprep.subr.bf16.mxu0 0
  %342 = vmatpush1.bf16.msra.mxu0 %v325
  %343 = vmatprep.subr.bf16.mxu0 0
  %344 = vmatpush2.bf16.msra.mxu0 0
  %345 = vmatprep.subr.bf16.mxu0 0
  %346 = vmatpush2.bf16.msra.mxu0 0
  %347 = vmatprep.subr.bf16.mxu0 0
  %348 = vmatpush2.bf16.msra.mxu0 0
  %349 = vmatprep.subr.bf16.mxu0 0
  %350 = vmatpush2.bf16.msra.mxu0 0
  %351 = vmatprep.subr.bf16.mxu0 0
  %352 = vmatpush2.bf16.msra.mxu0 0
  %353 = vmatprep.subr.bf16.mxu0 0
  %354 = vmatpush2.bf16.msra.mxu0 0
  %355 = vmatprep.subr.bf16.mxu0 0
  %356 = vmatpush2.bf16.msra.mxu0 0
  %357 = vmatprep.subr.bf16.mxu0 0
  %358 = vmatpush2.bf16.msra.mxu0 0
  %359 = vmatprep.mubr.bf16.mxu0 0
  %360 = vmatmul.mubr.bf16.gmra.mxu0 %v43
  %v361 = vpop.f32.mrf.mxu0
  %v362 = vadd.f32 %v24, %v361
  %v363 = vpop.f32.mrf.mxu0
  %v364 = vpop.f32.mrf.mxu0
  %v365 = vadd.f32 %v29, %v364
  %v366 = vpop.f32.mrf.mxu0
  %367 = vdwg.mxu0
  %v368 = vmax.f32 %v312, %v362
  %v369 = vmax.f32 %v315, %v365
  %v370 = vld [vmem:[%s266] sm:$0xe]
  %v371 = vld [vmem:[%s266 + $0x4] sm:$0x3]
  %v374 = vunpack.c.l.b16 %v370
  %v375 = vunpack.c.l.b16 %v371
  %v376 = vpack.c.b16 %v375, %v374
  %v377 = vrot.slane %v376, 1
  %v379 = vand.u32 %v377, %v48
  %381 = vmatprep.subr.bf16.mxu0 0
  %382 = vmatpush1.bf16.msra.mxu0 0
  %383 = vmatprep.subr.bf16.mxu0 0
  %384 = vmatpush1.bf16.msra.mxu0 0
  %385 = vmatprep.subr.bf16.mxu0 0
  %386 = vmatpush1.bf16.msra.mxu0 0
  %387 = vmatprep.subr.bf16.mxu0 0
  %388 = vmatpush1.bf16.msra.mxu0 0
  %389 = vmatprep.subr.bf16.mxu0 0
  %390 = vmatpush1.bf16.msra.mxu0 0
  %391 = vmatprep.subr.bf16.mxu0 0
  %392 = vmatpush1.bf16.msra.mxu0 0
  %393 = vmatprep.subr.bf16.mxu0 0
  %394 = vmatpush1.bf16.msra.mxu0 0
  %395 = vmatprep.subr.bf16.mxu0 0
  %396 = vmatpush1.bf16.msra.mxu0 %v379
  %397 = vmatprep.subr.bf16.mxu0 0
  %398 = vmatpush2.bf16.msra.mxu0 0
  %399 = vmatprep.subr.bf16.mxu0 0
  %400 = vmatpush2.bf16.msra.mxu0 0
  %401 = vmatprep.subr.bf16.mxu0 0
  %402 = vmatpush2.bf16.msra.mxu0 0
  %403 = vmatprep.subr.bf16.mxu0 0
  %404 = vmatpush2.bf16.msra.mxu0 0
  %405 = vmatprep.subr.bf16.mxu0 0
  %406 = vmatpush2.bf16.msra.mxu0 0
  %407 = vmatprep.subr.bf16.mxu0 0
  %408 = vmatpush2.bf16.msra.mxu0 0
  %409 = vmatprep.subr.bf16.mxu0 0
  %410 = vmatpush2.bf16.msra.mxu0 0
  %411 = vmatprep.subr.bf16.mxu0 0
  %412 = vmatpush2.bf16.msra.mxu0 0
  %413 = vmatprep.mubr.bf16.mxu0 0
  %414 = vmatmul.mubr.bf16.gmra.mxu0 %v43
  %v415 = vpop.f32.mrf.mxu0
  %v416 = vadd.f32 %v24, %v415
  %v417 = vpop.f32.mrf.mxu0
  %v418 = vpop.f32.mrf.mxu0
  %v419 = vadd.f32 %v29, %v418
  %v420 = vpop.f32.mrf.mxu0
  %421 = vdwg.mxu0
  %v422 = vmax.f32 %v368, %v416
  %v423 = vmax.f32 %v369, %v419
  %v425 = vshrl.u32 %v376, 16
  %v427 = vrot.slane %v425, 1
  %v428 = vshll.u32 %v376, 16
  %v430 = vrot.slane %v428, 2
  %v431 = vor.u32 %v427, %v430
  %v433 = vand.u32 %v431, %v48
  %435 = vmatprep.subr.bf16.mxu0 0
  %436 = vmatpush1.bf16.msra.mxu0 0
  %437 = vmatprep.subr.bf16.mxu0 0
  %438 = vmatpush1.bf16.msra.mxu0 0
  %439 = vmatprep.subr.bf16.mxu0 0
  %440 = vmatpush1.bf16.msra.mxu0 0
  %441 = vmatprep.subr.bf16.mxu0 0
  %442 = vmatpush1.bf16.msra.mxu0 0
  %443 = vmatprep.subr.bf16.mxu0 0
  %444 = vmatpush1.bf16.msra.mxu0 0
  %445 = vmatprep.subr.bf16.mxu0 0
  %446 = vmatpush1.bf16.msra.mxu0 0
  %447 = vmatprep.subr.bf16.mxu0 0
  %448 = vmatpush1.bf16.msra.mxu0 0
  %449 = vmatprep.subr.bf16.mxu0 0
  %450 = vmatpush1.bf16.msra.mxu0 %v433
  %451 = vmatprep.subr.bf16.mxu0 0
  %452 = vmatpush2.bf16.msra.mxu0 0
  %453 = vmatprep.subr.bf16.mxu0 0
  %454 = vmatpush2.bf16.msra.mxu0 0
  %455 = vmatprep.subr.bf16.mxu0 0
  %456 = vmatpush2.bf16.msra.mxu0 0
  %457 = vmatprep.subr.bf16.mxu0 0
  %458 = vmatpush2.bf16.msra.mxu0 0
  %459 = vmatprep.subr.bf16.mxu0 0
  %460 = vmatpush2.bf16.msra.mxu0 0
  %461 = vmatprep.subr.bf16.mxu0 0
  %462 = vmatpush2.bf16.msra.mxu0 0
  %463 = vmatprep.subr.bf16.mxu0 0
  %464 = vmatpush2.bf16.msra.mxu0 0
  %465 = vmatprep.subr.bf16.mxu0 0
  %466 = vmatpush2.bf16.msra.mxu0 0
  %467 = vmatprep.mubr.bf16.mxu0 0
  %468 = vmatmul.mubr.bf16.gmra.mxu0 %v43
  %v469 = vpop.f32.mrf.mxu0
  %v470 = vadd.f32 %v24, %v469
  %v471 = vpop.f32.mrf.mxu0
  %v472 = vpop.f32.mrf.mxu0
  %v473 = vadd.f32 %v29, %v472
  %v474 = vpop.f32.mrf.mxu0
  %475 = vdwg.mxu0
  %v476 = vmax.f32 %v422, %v470
  %v477 = vmax.f32 %v423, %v473
  %v478 = vmax.f32 %v476, 0.0
  %v479 = vmax.f32 %v477, 0.0
  %v480 = vpack.c.bf16 %v479, %v478
  %v482 = vunpack.c.l.b16 %v480
  %v483 = vunpack.c.h.b16 %v480
  %v484 = vpack.c.b16 %v482, %v482
  %v485 = vpack.c.b16 %v483, %v483
  %s488 = scalar_lea.vmem %s3, 8
  %489 = vst.msk [vmem:[%s488] sm:$0xf] %vm263, %v484
  %490 = vst.msk [vmem:[%s488 + $0x4] sm:$0xf] %vm263, %v485
  // Predicated region
  $region14: #{cnn1d_forward.3} parent=0 // pred_check
    _
  $region15: #{cnn1d_forward.3} parent=0 // pred_check_branch
    %492 = sbr.rel (0) target = $region17
  $region16: #{cnn1d_forward.3} parent=0 // pred_region
    _
  $region17: #{cnn1d_forward.3} parent=0 // pred_fallthru
    _
  // Predicated region
  $region18: #{cnn1d_forward.3} parent=0 // pred_check
    _
  $region19: #{cnn1d_forward.3} parent=0 // pred_check_branch
    %494 = sbr.rel (0) target = $region21
  $region20: #{cnn1d_forward.3} parent=0 // pred_region
    _
  $region21: #{cnn1d_forward.3} parent=0 // pred_fallthru
    _

// kernel: cnn1d_forward.5
$region0: #{cnn1d_forward.5}
  #allocation0 [shape = 'u32[]', space=smem, size = 0x4, offset = 0x4, fixed_abs, tag = 'smem constant byte address 0x4 - core index']
  #allocation1 [shape = 'u32[144,128]{1,0:T(1,128)}', space=vmem, size = 0x12000, scoped, tag = 'internal scratch']
  #allocation2 [shape = 'f32[2,128]{1,0:T(2,128)}', space=vmem, size = 0x400, scoped, tag = 'scratch operand']
  %s0 = inlined_call_operand.vmem [shape: bf16[2,32,16], index: 0, kind: input, shape index: {}]
  %s1 = inlined_call_operand.vmem [shape: bf16[32,16,128], index: 1, kind: input, shape index: {}]
  %s2 = inlined_call_operand.vmem [shape: f32[1,128], index: 2, kind: input, shape index: {}]
  %s3 = inlined_call_operand.vmem [shape: bf16[128,128], index: 3, kind: input, shape index: {}]
  %s4 = inlined_call_operand.vmem [shape: f32[1,128], index: 4, kind: input, shape index: {}]
  %s5 = inlined_call_operand.hbm [shape: f32[2,128], index: 5, kind: output, shape index: {}]
  %s6 = sld [smem:[#allocation0]]
  $region102: #{cnn1d_forward.5} parent=0
    _
  %s8 = ssub.s32 1, %s6
  %s9 = scalar_select 0, %s8, %s6
  $region1: #{cnn1d_forward.5} parent=0
    #allocation3 [shape = 'u8[8192]{0}', space=vmem, size = 0x2000, scoped, tag = 'input window, operand 0']
    #allocation4 [shape = 'u8[1024]{0}', space=vmem, size = 0x400, scoped, tag = 'output window, operand 0, single buffered']
    #allocation5 [shape = 's32[2]{0}', space=sflag, size = 0x8, scoped, tag = 'scoped memory for cnn1d_forward.5']
    %10 = vsyncpa [#allocation5], 0
    loop: start=0, step=1, limit=6
    $region2: #{cnn1d_forward.5} parent=1 // loop_pre_header
      _
    $region3: #{cnn1d_forward.5} parent=1 // loop_header
      %s12 = sphi 0, %s16
      %p13 = scmp.ge.s32.totalorder %s12, 6
      %s22 = sphi 0, %s24
      %s25 = sphi 0, %s22
      %s26 = sphi 0, %s25
      %s42 = sphi 0, %s26
      %s48 = sphi 0, %s50
      %s51 = sphi 0, %s48
      %s52 = sphi 0, %s51
      %s68 = sphi 0, %s52
      %s72 = sphi 0, %s72
      %s74 = sphi 0, %s72
      %s75 = sphi 0, %s74
      %s89 = sphi 0, %s75
      %s93 = sphi 0, %s93
      %s95 = sphi 0, %s93
      %s96 = sphi 0, %s95
      %s110 = sphi 0, %s96
      %s114 = sphi 0, %s114
      %s116 = sphi 0, %s114
      %s117 = sphi 0, %s116
      %s131 = sphi 0, %s117
      %s135 = sphi 0, %s135
      %s137 = sphi 0, %s135
      %s138 = sphi 0, %s137
      %s152 = sphi 0, %s138
    $region4: #{cnn1d_forward.5} parent=1 // loop_header_branch
      %15 = sbr.rel (%p13) target = $region8
    $region5: #{cnn1d_forward.5} parent=1 // loop_body
      %s17 = ssub.s32 %s12, 1
      %s18 = ssub.s32 %s12, 2
      %s19 = sadd.s32 %s12, 1
      %s20 = ssub.s32 %s12, %s19
      %p21 = scmp.eq.s32.totalorder %s20, 0
      %s23 = sadd.s32 %s22, 1
      %s24 = scalar_select %p21, %s22, %s23
      %p27 = pneg %p21
      %p28 = scmp.eq.s32.totalorder %s12, 3
      %p29 = por %p27, %p28
      %p30 = scmp.ne.s32.totalorder %s22, %s25
      %p31 = scmp.eq.s32.totalorder %s12, 0
      %p32 = por %p30, %p31
      %p33 = scmp.ne.s32.totalorder %s22, %s25
      %p34 = scmp.eq.s32.totalorder %s17, 3
      %p35 = por %p33, %p34
      %p36 = scmp.ne.s32.totalorder %s25, %s26
      %p37 = scmp.eq.s32.totalorder %s17, 0
      %p38 = por %p36, %p37
      %p39 = scmp.ne.s32.totalorder %s25, %s26
      %p40 = scmp.eq.s32.totalorder %s18, 3
      %p41 = por %p39, %p40
      %p43 = scmp.ne.s32.totalorder %s26, %s42
      %p44 = scmp.eq.s32.totalorder %s18, 0
      %p45 = por %p43, %p44
      %s46 = ssub.s32 %s12, %s19
      %p47 = scmp.eq.s32.totalorder %s46, 0
      %s49 = sadd.s32 %s48, 1
      %s50 = scalar_select %p47, %s48, %s49
      %p53 = pneg %p47
      %p54 = scmp.eq.s32.totalorder %s12, 3
      %p55 = por %p53, %p54
      %p56 = scmp.ne.s32.totalorder %s48, %s51
      %p57 = scmp.eq.s32.totalorder %s12, 0
      %p58 = por %p56, %p57
      %p59 = scmp.ne.s32.totalorder %s48, %s51
      %p60 = scmp.eq.s32.totalorder %s17, 3
      %p61 = por %p59, %p60
      %p62 = scmp.ne.s32.totalorder %s51, %s52
      %p63 = scmp.eq.s32.totalorder %s17, 0
      %p64 = por %p62, %p63
      %p65 = scmp.ne.s32.totalorder %s51, %s52
      %p66 = scmp.eq.s32.totalorder %s18, 3
      %p67 = por %p65, %p66
      %p69 = scmp.ne.s32.totalorder %s52, %s68
      %p70 = scmp.eq.s32.totalorder %s18, 0
      %p71 = por %p69, %p70
      %s73 = sadd.s32 %s72, 1
      %p76 = scmp.eq.s32.totalorder %s12, 3
      %p77 = scmp.ne.s32.totalorder %s72, %s74
      %p78 = scmp.eq.s32.totalorder %s12, 0
      %p79 = por %p77, %p78
      %p80 = scmp.ne.s32.totalorder %s72, %s74
      %p81 = scmp.eq.s32.totalorder %s17, 3
      %p82 = por %p80, %p81
      %p83 = scmp.ne.s32.totalorder %s74, %s75
      %p84 = scmp.eq.s32.totalorder %s17, 0
      %p85 = por %p83, %p84
      %p86 = scmp.ne.s32.totalorder %s74, %s75
      %p87 = scmp.eq.s32.totalorder %s18, 3
      %p88 = por %p86, %p87
      %p90 = scmp.ne.s32.totalorder %s75, %s89
      %p91 = scmp.eq.s32.totalorder %s18, 0
      %p92 = por %p90, %p91
      %s94 = sadd.s32 %s93, 1
      %p97 = scmp.eq.s32.totalorder %s12, 3
      %p98 = scmp.ne.s32.totalorder %s93, %s95
      %p99 = scmp.eq.s32.totalorder %s12, 0
      %p100 = por %p98, %p99
      %p101 = scmp.ne.s32.totalorder %s93, %s95
      %p102 = scmp.eq.s32.totalorder %s17, 3
      %p103 = por %p101, %p102
      %p104 = scmp.ne.s32.totalorder %s95, %s96
      %p105 = scmp.eq.s32.totalorder %s17, 0
      %p106 = por %p104, %p105
      %p107 = scmp.ne.s32.totalorder %s95, %s96
      %p108 = scmp.eq.s32.totalorder %s18, 3
      %p109 = por %p107, %p108
      %p111 = scmp.ne.s32.totalorder %s96, %s110
      %p112 = scmp.eq.s32.totalorder %s18, 0
      %p113 = por %p111, %p112
      %s115 = sadd.s32 %s114, 1
      %p118 = scmp.eq.s32.totalorder %s12, 3
      %p119 = scmp.ne.s32.totalorder %s114, %s116
      %p120 = scmp.eq.s32.totalorder %s12, 0
      %p121 = por %p119, %p120
      %p122 = scmp.ne.s32.totalorder %s114, %s116
      %p123 = scmp.eq.s32.totalorder %s17, 3
      %p124 = por %p122, %p123
      %p125 = scmp.ne.s32.totalorder %s116, %s117
      %p126 = scmp.eq.s32.totalorder %s17, 0
      %p127 = por %p125, %p126
      %p128 = scmp.ne.s32.totalorder %s116, %s117
      %p129 = scmp.eq.s32.totalorder %s18, 3
      %p130 = por %p128, %p129
      %p132 = scmp.ne.s32.totalorder %s117, %s131
      %p133 = scmp.eq.s32.totalorder %s18, 0
      %p134 = por %p132, %p133
      %s136 = sadd.s32 %s135, 1
      %p139 = scmp.eq.s32.totalorder %s12, 3
      %p140 = scmp.ne.s32.totalorder %s135, %s137
      %p141 = scmp.eq.s32.totalorder %s12, 0
      %p142 = por %p140, %p141
      %p143 = scmp.ne.s32.totalorder %s135, %s137
      %p144 = scmp.eq.s32.totalorder %s17, 3
      %p145 = por %p143, %p144
      %p146 = scmp.ne.s32.totalorder %s137, %s138
      %p147 = scmp.eq.s32.totalorder %s17, 0
      %p148 = por %p146, %p147
      %p149 = scmp.ne.s32.totalorder %s137, %s138
      %p150 = scmp.eq.s32.totalorder %s18, 3
      %p151 = por %p149, %p150
      %p153 = scmp.ne.s32.totalorder %s138, %s152
      %p154 = scmp.eq.s32.totalorder %s18, 0
      %p155 = por %p153, %p154
      %p156 = scmp.le.s32.totalorder 1, %s12
      %p157 = scmp.lt.s32.totalorder %s12, 5
      %p158 = pnand %p156, %p157
      %p159 = pneg %p158
      // Predicated region
      $region9: #{cnn1d_forward.5} parent=5 // pred_check
        _
      $region10: #{cnn1d_forward.5} parent=5 // pred_check_branch
        %161 = sbr.rel (%p158) target = $region12
      $region11: #{cnn1d_forward.5} parent=5 // pred_region
        %s162 = ssub.s32 %s12, 1
        // Predicated region
        $region13: #{cnn1d_forward.5} parent=11 // pred_check
          %p163 = pneg %p85
        $region14: #{cnn1d_forward.5} parent=11 // pred_check_branch
          %165 = sbr.rel (%p163) target = $region16
        $region15: #{cnn1d_forward.5} parent=11 // pred_region
          _
        $region16: #{cnn1d_forward.5} parent=11 // pred_fallthru
          _
        // Predicated region
        $region17: #{cnn1d_forward.5} parent=11 // pred_check
          %p166 = pneg %p106
        $region18: #{cnn1d_forward.5} parent=11 // pred_check_branch
          %168 = sbr.rel (%p166) target = $region20
        $region19: #{cnn1d_forward.5} parent=11 // pred_region
          _
        $region20: #{cnn1d_forward.5} parent=11 // pred_fallthru
          _
        // Predicated region
        $region21: #{cnn1d_forward.5} parent=11 // pred_check
          %p169 = pneg %p127
        $region22: #{cnn1d_forward.5} parent=11 // pred_check_branch
          %171 = sbr.rel (%p169) target = $region24
        $region23: #{cnn1d_forward.5} parent=11 // pred_region
          _
        $region24: #{cnn1d_forward.5} parent=11 // pred_fallthru
          _
      $region12: #{cnn1d_forward.5} parent=5 // pred_fallthru
        _
      %p172 = scmp.lt.s32.totalorder %s12, 4
      // Predicated region
      $region25: #{cnn1d_forward.5} parent=5 // pred_check
        %p173 = pneg %p172
      $region26: #{cnn1d_forward.5} parent=5 // pred_check_branch
        %175 = sbr.rel (%p173) target = $region28
      $region27: #{cnn1d_forward.5} parent=5 // pred_region
        // Predicated region
        $region29: #{cnn1d_forward.5} parent=27 // pred_check
          %p176 = pneg %p32
        $region30: #{cnn1d_forward.5} parent=27 // pred_check_branch
          %178 = sbr.rel (%p176) target = $region32
        $region31: #{cnn1d_forward.5} parent=27 // pred_region
          %s179 = sand.u32 %s22, 1
          %s180 = sand.u32 %s22, 1
          %s181 = smul.addr %s180, 8
          %s182 = scalar_lea.vmem [#allocation3], %s181
          %s183 = smul.addr %s12, 4
          %s184 = scalar_lea.vmem %s0, %s183
          // Predicated region
          $region33: #{cnn1d_forward.5} parent=31 // pred_check
            _
          $region34: #{cnn1d_forward.5} parent=31 // pred_check_branch
            %186 = sbr.rel (0) target = $region36
          $region35: #{cnn1d_forward.5} parent=31 // pred_region
            // Predicated region
            $region37: #{cnn1d_forward.5} parent=35 // pred_check
              _
            $region38: #{cnn1d_forward.5} parent=35 // pred_check_branch
              %188 = sbr.rel target = $region40
            $region39: #{cnn1d_forward.5} parent=35 // pred_region
              // Predicated region
              $region52: #{cnn1d_forward.5} parent=39 // pred_check
                _
              $region53: #{cnn1d_forward.5} parent=39 // pred_check_branch
                %206 = sbr.rel (0) target = $region55
              $region54: #{cnn1d_forward.5} parent=39 // pred_region
                loop: start=0, step=1, limit=1
                $region56: #{cnn1d_forward.5} parent=54 // loop_pre_header
                  _
                $region57: #{cnn1d_forward.5} parent=54 // loop_header
                  %s208 = sphi 0, %s212
                  %p209 = scmp.ge.s32.totalorder %s208, 1
                  %s213 = sphi %s184, %s184
                  %s214 = sphi %s182, %s182
                $region58: #{cnn1d_forward.5} parent=54 // loop_header_branch
                  %211 = sbr.rel (%p209) target = $region62
                $region59: #{cnn1d_forward.5} parent=54 // loop_body
                  _
                $region60: #{cnn1d_forward.5} parent=54 // loop_footer
                  %s212 = sadd.s32 1, %s208
                $region61: #{cnn1d_forward.5} parent=54 // loop_footer_branch
                  %207 = sbr.rel target = $region57
                $region62: #{cnn1d_forward.5} parent=54 // loop_exit
                  _
                %s216 = ssub.s32 16, 1
                loop: start=0, step=1, limit=1
                $region63: #{cnn1d_forward.5} parent=54 // loop_pre_header
                  _
                $region64: #{cnn1d_forward.5} parent=54 // loop_header
                  %s218 = sphi 0, %s222
                  %p219 = scmp.ge.s32.totalorder %s218, 1
                  %s223 = sphi %s184, %s184
                  %s224 = sphi %s182, %s182
                $region65: #{cnn1d_forward.5} parent=54 // loop_header_branch
                  %221 = sbr.rel (%p219) target = $region69
                $region66: #{cnn1d_forward.5} parent=54 // loop_body
                  %v225 = vld [vmem:[%s223] sm:%s216]
                  %226 = vst [vmem:[%s224] sm:%s216] %v225
                  %v227 = vld [vmem:[%s223 + $0x10] sm:%s216]
                  %228 = vst [vmem:[%s224 + $0x4] sm:%s216] %v227
                $region67: #{cnn1d_forward.5} parent=54 // loop_footer
                  %s222 = sadd.s32 1, %s218
                $region68: #{cnn1d_forward.5} parent=54 // loop_footer_branch
                  %217 = sbr.rel target = $region64
                $region69: #{cnn1d_forward.5} parent=54 // loop_exit
                  _
              $region55: #{cnn1d_forward.5} parent=39 // pred_fallthru
                _
            $region40: #{cnn1d_forward.5} parent=35 // pred_fallthru
              _
            // Predicated region
            $region41: #{cnn1d_forward.5} parent=35 // pred_check
              _
            $region42: #{cnn1d_forward.5} parent=35 // pred_check_branch
              %190 = sbr.rel (0) target = $region44
            $region43: #{cnn1d_forward.5} parent=35 // pred_region
              %s192 = ssub.s32 16, 1
              loop: start=0, step=1, limit=1
              $region45: #{cnn1d_forward.5} parent=43 // loop_pre_header
                _
              $region46: #{cnn1d_forward.5} parent=43 // loop_header
                %s194 = sphi 0, %s198
                %p195 = scmp.ge.s32.totalorder %s194, 1
                %s199 = sphi %s184, %s184
                %s200 = sphi %s182, %s182
              $region47: #{cnn1d_forward.5} parent=43 // loop_header_branch
                %197 = sbr.rel (%p195) target = $region51
              $region48: #{cnn1d_forward.5} parent=43 // loop_body
                %v201 = vld [vmem:[%s199] sm:%s192]
                %202 = vst [vmem:[%s200] sm:%s192] %v201
                %v203 = vld [vmem:[%s199 + $0x10] sm:%s192]
                %204 = vst [vmem:[%s200 + $0x4] sm:%s192] %v203
              $region49: #{cnn1d_forward.5} parent=43 // loop_footer
                %s198 = sadd.s32 1, %s194
              $region50: #{cnn1d_forward.5} parent=43 // loop_footer_branch
                %193 = sbr.rel target = $region46
              $region51: #{cnn1d_forward.5} parent=43 // loop_exit
                _
            $region44: #{cnn1d_forward.5} parent=35 // pred_fallthru
              _
          $region36: #{cnn1d_forward.5} parent=31 // pred_fallthru
            _
          %229 = vnop
        $region32: #{cnn1d_forward.5} parent=27 // pred_fallthru
          _
        // Predicated region
        $region70: #{cnn1d_forward.5} parent=27 // pred_check
          %p230 = pneg %p58
        $region71: #{cnn1d_forward.5} parent=27 // pred_check_branch
          %232 = sbr.rel (%p230) target = $region73
        $region72: #{cnn1d_forward.5} parent=27 // pred_region
          %s233 = smul.u32 8, %s12
          %p234 = scmp.lt.s32.totalorder %s233, 31
          %s235 = scalar_select %p234, %s233, 31
          %s236 = smul.addr %s235, 2
          %s237 = smul.addr %s236, 4
          %s238 = scalar_lea.vmem %s1, %s237
          %s239 = smul.u32 8, %s12
        $region73: #{cnn1d_forward.5} parent=27 // pred_fallthru
          _
      $region28: #{cnn1d_forward.5} parent=5 // pred_fallthru
        _
      %p240 = scmp.le.s32.totalorder 1, %s12
      %p241 = scmp.lt.s32.totalorder %s12, 5
      %p242 = pnand %p240, %p241
      %p243 = pneg %p242
      // Predicated region
      $region74: #{cnn1d_forward.5} parent=5 // pred_check
        _
      $region75: #{cnn1d_forward.5} parent=5 // pred_check_branch
        %245 = sbr.rel (%p242) target = $region77
      $region76: #{cnn1d_forward.5} parent=5 // pred_region
        %s246 = ssub.s32 %s12, 1
        %s247 = sand.u32 %s25, 1
        %s248 = sand.u32 %s25, 1
        %s249 = smul.addr %s248, 8
        %s250 = scalar_lea.vmem [#allocation3], %s249
        // Predicated region
        $region78: #{cnn1d_forward.5} parent=76 // pred_check
          %p251 = pneg %p38
        $region79: #{cnn1d_forward.5} parent=76 // pred_check_branch
          %253 = sbr.rel (%p251) target = $region81
        $region80: #{cnn1d_forward.5} parent=76 // pred_region
          _
        $region81: #{cnn1d_forward.5} parent=76 // pred_fallthru
          _
        %s254 = sand.u32 %s25, 1
        %s255 = sand.u32 %s25, 1
        %s256 = smul.addr %s255, 8
        %s257 = scalar_lea.vmem [#allocation3], %s256
        %p258 = pneg %p38
        %p259 = pneg %p35
        %s260 = smul.u32 8, %s17
        %p261 = scmp.lt.s32.totalorder %s260, 31
        %s262 = scalar_select %p261, %s260, 31
        %s263 = smul.addr %s262, 2
        %s264 = smul.addr %s263, 4
        %s265 = scalar_lea.vmem %s1, %s264
        %p266 = pneg %p64
        %p267 = pneg %p61
        %p268 = pneg %p85
        %p269 = pneg %p82
        %p270 = pneg %p106
        %p271 = pneg %p103
        %p272 = pneg %p127
        %p273 = pneg %p124
        %p274 = pneg %p148
        %p275 = pneg %p145
        %s276 = smul.u32 8, %s17
        %p277 = scmp.lt.s32.totalorder %s276, 31
        %s278 = scalar_select %p277, %s276, 31
        %s279 = smul.addr %s278, 2
        %s280 = smul.addr %s279, 4
        %s281 = scalar_lea.vmem %s1, %s280
        %s282 = smul.u32 8, %s17
        %p284 = scmp.eq.s32.totalorder %s17, 0
        // Predicated region
        $region82: #{cnn1d_forward.5} parent=76 // pred_check
          %p285 = pneg %p284
        $region83: #{cnn1d_forward.5} parent=76 // pred_check_branch
          %287 = sbr.rel (%p285) target = $region85
        $region84: #{cnn1d_forward.5} parent=76 // pred_region
          %288 = vst [vmem:[#allocation2] sm:$0x3] 0.0
        $region85: #{cnn1d_forward.5} parent=76 // pred_fallthru
          _
        %v289 = vld [vmem:[%s250] sm:$0x1]
        %v290 = vld [vmem:[%s250 + $0x4] sm:$0x1]
        %v291 = vld [vmem:[%s281] sm:$0xf]
        %v292 = vld [vmem:[%s281 + $0x4] sm:$0xf]
        %s293 = scalar_lea.vmem %s281, 8
        %v294 = vld [vmem:[%s293] sm:$0xf]
        %v295 = vld [vmem:[%s293 + $0x4] sm:$0xf]
        %v298 = vunpack.c.l.b16 %v289
        %v299 = vunpack.c.l.b16 %v290
        %v300 = vpack.c.b16 %v298, %v298
        %v301 = vpack.c.b16 %v299, %v299
        %v302 = vunpack.c.l.b16 %v300
        %v303 = vunpack.c.l.b16 %v301
        %v304 = vrot.slane %v302, 1
        %vm305 = vcmask 1041409
        %v306 = vsel %vm305, %v303, %v304
        %v307 = vpack.c.b16 %v306, %v306
        %v310 = vunpack.c.l.b16 %v294
        %v311 = vunpack.c.l.b16 %v295
        %v312 = vpack.c.b16 %v311, %v310
        %vm314 = vcmask 130048
        %v316 = vsel %vm314, %v307, 0
        %318 = vmatprep.subr.bf16.mxu0 0
        %319 = vmatpush1.bf16.msra.mxu0 0
        %320 = vmatprep.subr.bf16.mxu0 0
        %321 = vmatpush1.bf16.msra.mxu0 0
        %322 = vmatprep.subr.bf16.mxu0 0
        %323 = vmatpush1.bf16.msra.mxu0 0
        %324 = vmatprep.subr.bf16.mxu0 0
        %325 = vmatpush1.bf16.msra.mxu0 0
        %326 = vmatprep.subr.bf16.mxu0 0
        %327 = vmatpush1.bf16.msra.mxu0 0
        %328 = vmatprep.subr.bf16.mxu0 0
        %329 = vmatpush1.bf16.msra.mxu0 0
        %330 = vmatprep.subr.bf16.mxu0 0
        %331 = vmatpush1.bf16.msra.mxu0 0
        %332 = vmatprep.subr.bf16.mxu0 0
        %333 = vmatpush1.bf16.msra.mxu0 %v312
        %334 = vmatprep.subr.bf16.mxu0 0
        %335 = vmatpush2.bf16.msra.mxu0 0
        %336 = vmatprep.subr.bf16.mxu0 0
        %337 = vmatpush2.bf16.msra.mxu0 0
        %338 = vmatprep.subr.bf16.mxu0 0
        %339 = vmatpush2.bf16.msra.mxu0 0
        %340 = vmatprep.subr.bf16.mxu0 0
        %341 = vmatpush2.bf16.msra.mxu0 0
        %342 = vmatprep.subr.bf16.mxu0 0
        %343 = vmatpush2.bf16.msra.mxu0 0
        %344 = vmatprep.subr.bf16.mxu0 0
        %345 = vmatpush2.bf16.msra.mxu0 0
        %346 = vmatprep.subr.bf16.mxu0 0
        %347 = vmatpush2.bf16.msra.mxu0 0
        %348 = vmatprep.subr.bf16.mxu0 0
        %349 = vmatpush2.bf16.msra.mxu0 0
        %350 = vmatprep.mubr.bf16.mxu0 0
        %351 = vmatmul.mubr.bf16.gmra.mxu0 %v316
        %v352 = vpop.f32.mrf.mxu0
        %v353 = vadd.f32 0.0, %v352
        %v354 = vpop.f32.mrf.mxu0
        %v355 = vpop.f32.mrf.mxu0
        %v356 = vpop.f32.mrf.mxu0
        %357 = vdwg.mxu0
        %v358 = vrot.slane %v303, 7
        %v359 = vsel %vm305, %v358, %v302
        %v360 = vpack.c.b16 %v359, %v359
        %v363 = vunpack.c.l.b16 %v291
        %v364 = vunpack.c.l.b16 %v292
        %v365 = vpack.c.b16 %v364, %v363
        %v368 = vsel %vm314, %v360, 0
        %370 = vmatprep.subr.bf16.mxu0 0
        %371 = vmatpush1.bf16.msra.mxu0 0
        %372 = vmatprep.subr.bf16.mxu0 0
        %373 = vmatpush1.bf16.msra.mxu0 0
        %374 = vmatprep.subr.bf16.mxu0 0
        %375 = vmatpush1.bf16.msra.mxu0 0
        %376 = vmatprep.subr.bf16.mxu0 0
        %377 = vmatpush1.bf16.msra.mxu0 0
        %378 = vmatprep.subr.bf16.mxu0 0
        %379 = vmatpush1.bf16.msra.mxu0 0
        %380 = vmatprep.subr.bf16.mxu0 0
        %381 = vmatpush1.bf16.msra.mxu0 0
        %382 = vmatprep.subr.bf16.mxu0 0
        %383 = vmatpush1.bf16.msra.mxu0 0
        %384 = vmatprep.subr.bf16.mxu0 0
        %385 = vmatpush1.bf16.msra.mxu0 %v365
        %386 = vmatprep.subr.bf16.mxu0 0
        %387 = vmatpush2.bf16.msra.mxu0 0
        %388 = vmatprep.subr.bf16.mxu0 0
        %389 = vmatpush2.bf16.msra.mxu0 0
        %390 = vmatprep.subr.bf16.mxu0 0
        %391 = vmatpush2.bf16.msra.mxu0 0
        %392 = vmatprep.subr.bf16.mxu0 0
        %393 = vmatpush2.bf16.msra.mxu0 0
        %394 = vmatprep.subr.bf16.mxu0 0
        %395 = vmatpush2.bf16.msra.mxu0 0
        %396 = vmatprep.subr.bf16.mxu0 0
        %397 = vmatpush2.bf16.msra.mxu0 0
        %398 = vmatprep.subr.bf16.mxu0 0
        %399 = vmatpush2.bf16.msra.mxu0 0
        %400 = vmatprep.subr.bf16.mxu0 0
        %401 = vmatpush2.bf16.msra.mxu0 0
        %402 = vmatprep.mubr.bf16.mxu0 0
        %403 = vmatmul.mubr.bf16.gmra.mxu0 %v368
        %v404 = vpop.f32.mrf.mxu0
        %v405 = vadd.f32 %v353, %v404
        %v406 = vpop.f32.mrf.mxu0
        %v407 = vpop.f32.mrf.mxu0
        %v408 = vpop.f32.mrf.mxu0
        %409 = vdwg.mxu0
        %v410 = vld [vmem:[%s250] sm:$0x2]
        %v411 = vld [vmem:[%s250 + $0x4] sm:$0x2]
        %s412 = scalar_lea.vmem %s281, 16
        %v413 = vld [vmem:[%s412] sm:$0xf]
        %v414 = vld [vmem:[%s412 + $0x4] sm:$0xf]
        %v417 = vunpack.c.l.b16 %v410
        %v418 = vunpack.c.l.b16 %v411
        %v419 = vpack.c.b16 %v417, %v417
        %v420 = vpack.c.b16 %v418, %v418
        %v421 = vunpack.c.l.b16 %v419
        %v422 = vunpack.c.l.b16 %v420
        %v423 = vrot.slane %v421, 2
        %v424 = vrot.slane %v422, 1
        %v425 = vsel %vm305, %v424, %v423
        %v426 = vpack.c.b16 %v425, %v425
        %v429 = vunpack.c.l.b16 %v413
        %v430 = vunpack.c.l.b16 %v414
        %v431 = vpack.c.b16 %v430, %v429
        %v434 = vsel %vm314, %v426, 0
        %436 = vmatprep.subr.bf16.mxu0 0
        %437 = vmatpush1.bf16.msra.mxu0 0
        %438 = vmatprep.subr.bf16.mxu0 0
        %439 = vmatpush1.bf16.msra.mxu0 0
        %440 = vmatprep.subr.bf16.mxu0 0
        %441 = vmatpush1.bf16.msra.mxu0 0
        %442 = vmatprep.subr.bf16.mxu0 0
        %443 = vmatpush1.bf16.msra.mxu0 0
        %444 = vmatprep.subr.bf16.mxu0 0
        %445 = vmatpush1.bf16.msra.mxu0 0
        %446 = vmatprep.subr.bf16.mxu0 0
        %447 = vmatpush1.bf16.msra.mxu0 0
        %448 = vmatprep.subr.bf16.mxu0 0
        %449 = vmatpush1.bf16.msra.mxu0 0
        %450 = vmatprep.subr.bf16.mxu0 0
        %451 = vmatpush1.bf16.msra.mxu0 %v431
        %452 = vmatprep.subr.bf16.mxu0 0
        %453 = vmatpush2.bf16.msra.mxu0 0
        %454 = vmatprep.subr.bf16.mxu0 0
        %455 = vmatpush2.bf16.msra.mxu0 0
        %456 = vmatprep.subr.bf16.mxu0 0
        %457 = vmatpush2.bf16.msra.mxu0 0
        %458 = vmatprep.subr.bf16.mxu0 0
        %459 = vmatpush2.bf16.msra.mxu0 0
        %460 = vmatprep.subr.bf16.mxu0 0
        %461 = vmatpush2.bf16.msra.mxu0 0
        %462 = vmatprep.subr.bf16.mxu0 0
        %463 = vmatpush2.bf16.msra.mxu0 0
        %464 = vmatprep.subr.bf16.mxu0 0
        %465 = vmatpush2.bf16.msra.mxu0 0
        %466 = vmatprep.subr.bf16.mxu0 0
        %467 = vmatpush2.bf16.msra.mxu0 0
        %468 = vmatprep.mubr.bf16.mxu0 0
        %469 = vmatmul.mubr.bf16.gmra.mxu0 %v434
        %v470 = vpop.f32.mrf.mxu0
        %v471 = vadd.f32 0.0, %v470
        %v472 = vpop.f32.mrf.mxu0
        %v473 = vpop.f32.mrf.mxu0
        %v474 = vpop.f32.mrf.mxu0
        %475 = vdwg.mxu0
        %v476 = vadd.f32 %v405, %v471
        %s477 = scalar_lea.vmem %s281, 24
        %v478 = vld [vmem:[%s477] sm:$0xf]
        %v479 = vld [vmem:[%s477 + $0x4] sm:$0xf]
        %v480 = vrot.slane %v421, 3
        %v481 = vrot.slane %v422, 2
        %v482 = vsel %vm305, %v481, %v480
        %v483 = vpack.c.b16 %v482, %v482
        %v486 = vunpack.c.l.b16 %v478
        %v487 = vunpack.c.l.b16 %v479
        %v488 = vpack.c.b16 %v487, %v486
        %v491 = vsel %vm314, %v483, 0
        %493 = vmatprep.subr.bf16.mxu0 0
        %494 = vmatpush1.bf16.msra.mxu0 0
        %495 = vmatprep.subr.bf16.mxu0 0
        %496 = vmatpush1.bf16.msra.mxu0 0
        %497 = vmatprep.subr.bf16.mxu0 0
        %498 = vmatpush1.bf16.msra.mxu0 0
        %499 = vmatprep.subr.bf16.mxu0 0
        %500 = vmatpush1.bf16.msra.mxu0 0
        %501 = vmatprep.subr.bf16.mxu0 0
        %502 = vmatpush1.bf16.msra.mxu0 0
        %503 = vmatprep.subr.bf16.mxu0 0
        %504 = vmatpush1.bf16.msra.mxu0 0
        %505 = vmatprep.subr.bf16.mxu0 0
        %506 = vmatpush1.bf16.msra.mxu0 0
        %507 = vmatprep.subr.bf16.mxu0 0
        %508 = vmatpush1.bf16.msra.mxu0 %v488
        %509 = vmatprep.subr.bf16.mxu0 0
        %510 = vmatpush2.bf16.msra.mxu0 0
        %511 = vmatprep.subr.bf16.mxu0 0
        %512 = vmatpush2.bf16.msra.mxu0 0
        %513 = vmatprep.subr.bf16.mxu0 0
        %514 = vmatpush2.bf16.msra.mxu0 0
        %515 = vmatprep.subr.bf16.mxu0 0
        %516 = vmatpush2.bf16.msra.mxu0 0
        %517 = vmatprep.subr.bf16.mxu0 0
        %518 = vmatpush2.bf16.msra.mxu0 0
        %519 = vmatprep.subr.bf16.mxu0 0
        %520 = vmatpush2.bf16.msra.mxu0 0
        %521 = vmatprep.subr.bf16.mxu0 0
        %522 = vmatpush2.bf16.msra.mxu0 0
        %523 = vmatprep.subr.bf16.mxu0 0
        %524 = vmatpush2.bf16.msra.mxu0 0
        %525 = vmatprep.mubr.bf16.mxu0 0
        %526 = vmatmul.mubr.bf16.gmra.mxu0 %v491
        %v527 = vpop.f32.mrf.mxu0
        %v528 = vadd.f32 0.0, %v527
        %v529 = vpop.f32.mrf.mxu0
        %v530 = vpop.f32.mrf.mxu0
        %v531 = vpop.f32.mrf.mxu0
        %532 = vdwg.mxu0
        %v533 = vadd.f32 %v476, %v528
        %v534 = vld [vmem:[%s250] sm:$0x4]
        %v535 = vld [vmem:[%s250 + $0x4] sm:$0x4]
        %s536 = scalar_lea.vmem %s281, 32
        %v537 = vld [vmem:[%s536] sm:$0xf]
        %v538 = vld [vmem:[%s536 + $0x4] sm:$0xf]
        %v541 = vunpack.c.l.b16 %v534
        %v542 = vunpack.c.l.b16 %v535
        %v543 = vpack.c.b16 %v541, %v541
        %v544 = vpack.c.b16 %v542, %v542
        %v545 = vunpack.c.l.b16 %v543
        %v546 = vunpack.c.l.b16 %v544
        %v547 = vrot.slane %v545, 4
        %v548 = vrot.slane %v546, 3
        %v549 = vsel %vm305, %v548, %v547
        %v550 = vpack.c.b16 %v549, %v549
        %v553 = vunpack.c.l.b16 %v537
        %v554 = vunpack.c.l.b16 %v538
        %v555 = vpack.c.b16 %v554, %v553
        %v558 = vsel %vm314, %v550, 0
        %560 = vmatprep.subr.bf16.mxu0 0
        %561 = vmatpush1.bf16.msra.mxu0 0
        %562 = vmatprep.subr.bf16.mxu0 0
        %563 = vmatpush1.bf16.msra.mxu0 0
        %564 = vmatprep.subr.bf16.mxu0 0
        %565 = vmatpush1.bf16.msra.mxu0 0
        %566 = vmatprep.subr.bf16.mxu0 0
        %567 = vmatpush1.bf16.msra.mxu0 0
        %568 = vmatprep.subr.bf16.mxu0 0
        %569 = vmatpush1.bf16.msra.mxu0 0
        %570 = vmatprep.subr.bf16.mxu0 0
        %571 = vmatpush1.bf16.msra.mxu0 0
        %572 = vmatprep.subr.bf16.mxu0 0
        %573 = vmatpush1.bf16.msra.mxu0 0
        %574 = vmatprep.subr.bf16.mxu0 0
        %575 = vmatpush1.bf16.msra.mxu0 %v555
        %576 = vmatprep.subr.bf16.mxu0 0
        %577 = vmatpush2.bf16.msra.mxu0 0
        %578 = vmatprep.subr.bf16.mxu0 0
        %579 = vmatpush2.bf16.msra.mxu0 0
        %580 = vmatprep.subr.bf16.mxu0 0
        %581 = vmatpush2.bf16.msra.mxu0 0
        %582 = vmatprep.subr.bf16.mxu0 0
        %583 = vmatpush2.bf16.msra.mxu0 0
        %584 = vmatprep.subr.bf16.mxu0 0
        %585 = vmatpush2.bf16.msra.mxu0 0
        %586 = vmatprep.subr.bf16.mxu0 0
        %587 = vmatpush2.bf16.msra.mxu0 0
        %588 = vmatprep.subr.bf16.mxu0 0
        %589 = vmatpush2.bf16.msra.mxu0 0
        %590 = vmatprep.subr.bf16.mxu0 0
        %591 = vmatpush2.bf16.msra.mxu0 0
        %592 = vmatprep.mubr.bf16.mxu0 0
        %593 = vmatmul.mubr.bf16.gmra.mxu0 %v558
        %v594 = vpop.f32.mrf.mxu0
        %v595 = vadd.f32 0.0, %v594
        %v596 = vpop.f32.mrf.mxu0
        %v597 = vpop.f32.mrf.mxu0
        %v598 = vpop.f32.mrf.mxu0
        %599 = vdwg.mxu0
        %v600 = vadd.f32 %v533, %v595
        %s601 = scalar_lea.vmem %s281, 40
        %v602 = vld [vmem:[%s601] sm:$0xf]
        %v603 = vld [vmem:[%s601 + $0x4] sm:$0xf]
        %v604 = vrot.slane %v545, 5
        %v605 = vrot.slane %v546, 4
        %v606 = vsel %vm305, %v605, %v604
        %v607 = vpack.c.b16 %v606, %v606
        %v610 = vunpack.c.l.b16 %v602
        %v611 = vunpack.c.l.b16 %v603
        %v612 = vpack.c.b16 %v611, %v610
        %v615 = vsel %vm314, %v607, 0
        %617 = vmatprep.subr.bf16.mxu0 0
        %618 = vmatpush1.bf16.msra.mxu0 0
        %619 = vmatprep.subr.bf16.mxu0 0
        %620 = vmatpush1.bf16.msra.mxu0 0
        %621 = vmatprep.subr.bf16.mxu0 0
        %622 = vmatpush1.bf16.msra.mxu0 0
        %623 = vmatprep.subr.bf16.mxu0 0
        %624 = vmatpush1.bf16.msra.mxu0 0
        %625 = vmatprep.subr.bf16.mxu0 0
        %626 = vmatpush1.bf16.msra.mxu0 0
        %627 = vmatprep.subr.bf16.mxu0 0
        %628 = vmatpush1.bf16.msra.mxu0 0
        %629 = vmatprep.subr.bf16.mxu0 0
        %630 = vmatpush1.bf16.msra.mxu0 0
        %631 = vmatprep.subr.bf16.mxu0 0
        %632 = vmatpush1.bf16.msra.mxu0 %v612
        %633 = vmatprep.subr.bf16.mxu0 0
        %634 = vmatpush2.bf16.msra.mxu0 0
        %635 = vmatprep.subr.bf16.mxu0 0
        %636 = vmatpush2.bf16.msra.mxu0 0
        %637 = vmatprep.subr.bf16.mxu0 0
        %638 = vmatpush2.bf16.msra.mxu0 0
        %639 = vmatprep.subr.bf16.mxu0 0
        %640 = vmatpush2.bf16.msra.mxu0 0
        %641 = vmatprep.subr.bf16.mxu0 0
        %642 = vmatpush2.bf16.msra.mxu0 0
        %643 = vmatprep.subr.bf16.mxu0 0
        %644 = vmatpush2.bf16.msra.mxu0 0
        %645 = vmatprep.subr.bf16.mxu0 0
        %646 = vmatpush2.bf16.msra.mxu0 0
        %647 = vmatprep.subr.bf16.mxu0 0
        %648 = vmatpush2.bf16.msra.mxu0 0
        %649 = vmatprep.mubr.bf16.mxu0 0
        %650 = vmatmul.mubr.bf16.gmra.mxu0 %v615
        %v651 = vpop.f32.mrf.mxu0
        %v652 = vadd.f32 0.0, %v651
        %v653 = vpop.f32.mrf.mxu0
        %v654 = vpop.f32.mrf.mxu0
        %v655 = vpop.f32.mrf.mxu0
        %656 = vdwg.mxu0
        %v657 = vadd.f32 %v600, %v652
        %v658 = vld [vmem:[%s250] sm:$0x8]
        %v659 = vld [vmem:[%s250 + $0x4] sm:$0x8]
        %s660 = scalar_lea.vmem %s281, 48
        %v661 = vld [vmem:[%s660] sm:$0xf]
        %v662 = vld [vmem:[%s660 + $0x4] sm:$0xf]
        %v665 = vunpack.c.l.b16 %v658
        %v666 = vunpack.c.l.b16 %v659
        %v667 = vpack.c.b16 %v665, %v665
        %v668 = vpack.c.b16 %v666, %v666
        %v669 = vunpack.c.l.b16 %v667
        %v670 = vunpack.c.l.b16 %v668
        %v671 = vrot.slane %v669, 6
        %v672 = vrot.slane %v670, 5
        %v673 = vsel %vm305, %v672, %v671
        %v674 = vpack.c.b16 %v673, %v673
        %v677 = vunpack.c.l.b16 %v661
        %v678 = vunpack.c.l.b16 %v662
        %v679 = vpack.c.b16 %v678, %v677
        %v682 = vsel %vm314, %v674, 0
        %684 = vmatprep.subr.bf16.mxu0 0
        %685 = vmatpush1.bf16.msra.mxu0 0
        %686 = vmatprep.subr.bf16.mxu0 0
        %687 = vmatpush1.bf16.msra.mxu0 0
        %688 = vmatprep.subr.bf16.mxu0 0
        %689 = vmatpush1.bf16.msra.mxu0 0
        %690 = vmatprep.subr.bf16.mxu0 0
        %691 = vmatpush1.bf16.msra.mxu0 0
        %692 = vmatprep.subr.bf16.mxu0 0
        %693 = vmatpush1.bf16.msra.mxu0 0
        %694 = vmatprep.subr.bf16.mxu0 0
        %695 = vmatpush1.bf16.msra.mxu0 0
        %696 = vmatprep.subr.bf16.mxu0 0
        %697 = vmatpush1.bf16.msra.mxu0 0
        %698 = vmatprep.subr.bf16.mxu0 0
        %699 = vmatpush1.bf16.msra.mxu0 %v679
        %700 = vmatprep.subr.bf16.mxu0 0
        %701 = vmatpush2.bf16.msra.mxu0 0
        %702 = vmatprep.subr.bf16.mxu0 0
        %703 = vmatpush2.bf16.msra.mxu0 0
        %704 = vmatprep.subr.bf16.mxu0 0
        %705 = vmatpush2.bf16.msra.mxu0 0
        %706 = vmatprep.subr.bf16.mxu0 0
        %707 = vmatpush2.bf16.msra.mxu0 0
        %708 = vmatprep.subr.bf16.mxu0 0
        %709 = vmatpush2.bf16.msra.mxu0 0
        %710 = vmatprep.subr.bf16.mxu0 0
        %711 = vmatpush2.bf16.msra.mxu0 0
        %712 = vmatprep.subr.bf16.mxu0 0
        %713 = vmatpush2.bf16.msra.mxu0 0
        %714 = vmatprep.subr.bf16.mxu0 0
        %715 = vmatpush2.bf16.msra.mxu0 0
        %716 = vmatprep.mubr.bf16.mxu0 0
        %717 = vmatmul.mubr.bf16.gmra.mxu0 %v682
        %v718 = vpop.f32.mrf.mxu0
        %v719 = vadd.f32 0.0, %v718
        %v720 = vpop.f32.mrf.mxu0
        %v721 = vpop.f32.mrf.mxu0
        %v722 = vpop.f32.mrf.mxu0
        %723 = vdwg.mxu0
        %v724 = vadd.f32 %v657, %v719
        %s725 = scalar_lea.vmem %s281, 56
        %v726 = vld [vmem:[%s725] sm:$0xf]
        %v727 = vld [vmem:[%s725 + $0x4] sm:$0xf]
        %v728 = vrot.slane %v669, 7
        %v729 = vrot.slane %v670, 6
        %v730 = vsel %vm305, %v729, %v728
        %v731 = vpack.c.b16 %v730, %v730
        %v734 = vunpack.c.l.b16 %v726
        %v735 = vunpack.c.l.b16 %v727
        %v736 = vpack.c.b16 %v735, %v734
        %v739 = vsel %vm314, %v731, 0
        %741 = vmatprep.subr.bf16.mxu0 0
        %742 = vmatpush1.bf16.msra.mxu0 0
        %743 = vmatprep.subr.bf16.mxu0 0
        %744 = vmatpush1.bf16.msra.mxu0 0
        %745 = vmatprep.subr.bf16.mxu0 0
        %746 = vmatpush1.bf16.msra.mxu0 0
        %747 = vmatprep.subr.bf16.mxu0 0
        %748 = vmatpush1.bf16.msra.mxu0 0
        %749 = vmatprep.subr.bf16.mxu0 0
        %750 = vmatpush1.bf16.msra.mxu0 0
        %751 = vmatprep.subr.bf16.mxu0 0
        %752 = vmatpush1.bf16.msra.mxu0 0
        %753 = vmatprep.subr.bf16.mxu0 0
        %754 = vmatpush1.bf16.msra.mxu0 0
        %755 = vmatprep.subr.bf16.mxu0 0
        %756 = vmatpush1.bf16.msra.mxu0 %v736
        %757 = vmatprep.subr.bf16.mxu0 0
        %758 = vmatpush2.bf16.msra.mxu0 0
        %759 = vmatprep.subr.bf16.mxu0 0
        %760 = vmatpush2.bf16.msra.mxu0 0
        %761 = vmatprep.subr.bf16.mxu0 0
        %762 = vmatpush2.bf16.msra.mxu0 0
        %763 = vmatprep.subr.bf16.mxu0 0
        %764 = vmatpush2.bf16.msra.mxu0 0
        %765 = vmatprep.subr.bf16.mxu0 0
        %766 = vmatpush2.bf16.msra.mxu0 0
        %767 = vmatprep.subr.bf16.mxu0 0
        %768 = vmatpush2.bf16.msra.mxu0 0
        %769 = vmatprep.subr.bf16.mxu0 0
        %770 = vmatpush2.bf16.msra.mxu0 0
        %771 = vmatprep.subr.bf16.mxu0 0
        %772 = vmatpush2.bf16.msra.mxu0 0
        %773 = vmatprep.mubr.bf16.mxu0 0
        %774 = vmatmul.mubr.bf16.gmra.mxu0 %v739
        %v775 = vpop.f32.mrf.mxu0
        %v776 = vadd.f32 0.0, %v775
        %v777 = vpop.f32.mrf.mxu0
        %v778 = vpop.f32.mrf.mxu0
        %v779 = vpop.f32.mrf.mxu0
        %780 = vdwg.mxu0
        %v781 = vadd.f32 %v724, %v776
        %v782 = vld [vmem:[#allocation2] sm:$0x3]
        %v783 = vadd.f32 %v782, %v781
        %784 = vst [vmem:[#allocation2] sm:$0x3] %v783
        %p785 = scmp.eq.s32.totalorder %s17, 3
        // Predicated region
        $region86: #{cnn1d_forward.5} parent=76 // pred_check
          %p786 = pneg %p785
        $region87: #{cnn1d_forward.5} parent=76 // pred_check_branch
          %788 = sbr.rel (%p786) target = $region89
        $region88: #{cnn1d_forward.5} parent=76 // pred_region
          %v789 = vld [vmem:[#allocation2] sm:$0x3]
          %v790 = vld [vmem:[%s2] sm:$0x1]
          %v792 = vlaneseq
          %v793 = vshrl.u32 %v792, 7
          %v794 = vsub.s32 0, %v793
          %v795 = vrot.slane %v790, %v794
          %v797 = vadd.f32 %v789, %v795
          %v798 = vmax.f32 %v797, 0.0
          %v799 = vpack.c.bf16 %v798, %v798
          %v800 = vld [vmem:[%s3] sm:$0xf]
          %v801 = vld [vmem:[%s3 + $0x4] sm:$0xf]
          %v802 = vld [vmem:[%s3 + $0x8] sm:$0xf]
          %v803 = vld [vmem:[%s3 + $0xc] sm:$0xf]
          %v804 = vld [vmem:[%s3 + $0x10] sm:$0xf]
          %v805 = vld [vmem:[%s3 + $0x14] sm:$0xf]
          %v806 = vld [vmem:[%s3 + $0x18] sm:$0xf]
          %v807 = vld [vmem:[%s3 + $0x1c] sm:$0xf]
          %v808 = vld [vmem:[%s3 + $0x20] sm:$0xf]
          %v809 = vld [vmem:[%s3 + $0x24] sm:$0xf]
          %v810 = vld [vmem:[%s3 + $0x28] sm:$0xf]
          %v811 = vld [vmem:[%s3 + $0x2c] sm:$0xf]
          %v812 = vld [vmem:[%s3 + $0x30] sm:$0xf]
          %v813 = vld [vmem:[%s3 + $0x34] sm:$0xf]
          %v814 = vld [vmem:[%s3 + $0x38] sm:$0xf]
          %v815 = vld [vmem:[%s3 + $0x3c] sm:$0xf]
          %v816 = vld [vmem:[%s4] sm:$0x1]
          %v818 = vlaneseq
          %v819 = vshrl.u32 %v818, 7
          %v820 = vsub.s32 0, %v819
          %v821 = vrot.slane %v816, %v820
          %v839 = vunpack.c.l.b16 %v800
          %v840 = vunpack.c.l.b16 %v801
          %v841 = vunpack.c.l.b16 %v802
          %v842 = vunpack.c.l.b16 %v803
          %v843 = vunpack.c.l.b16 %v804
          %v844 = vunpack.c.l.b16 %v805
          %v845 = vunpack.c.l.b16 %v806
          %v846 = vunpack.c.l.b16 %v807
          %v847 = vunpack.c.l.b16 %v808
          %v848 = vunpack.c.l.b16 %v809
          %v849 = vunpack.c.l.b16 %v810
          %v850 = vunpack.c.l.b16 %v811
          %v851 = vunpack.c.l.b16 %v812
          %v852 = vunpack.c.l.b16 %v813
          %v853 = vunpack.c.l.b16 %v814
          %v854 = vunpack.c.l.b16 %v815
          %v855 = vpack.c.b16 %v840, %v839
          %v856 = vpack.c.b16 %v842, %v841
          %v857 = vpack.c.b16 %v844, %v843
          %v858 = vpack.c.b16 %v846, %v845
          %v859 = vpack.c.b16 %v848, %v847
          %v860 = vpack.c.b16 %v850, %v849
          %v861 = vpack.c.b16 %v852, %v851
          %v862 = vpack.c.b16 %v854, %v853
          %871 = vmatprep.subr.bf16.mxu0 0
          %872 = vmatpush1.bf16.msra.mxu0 %v862
          %873 = vmatprep.subr.bf16.mxu0 0
          %874 = vmatpush1.bf16.msra.mxu0 %v861
          %875 = vmatprep.subr.bf16.mxu0 0
          %876 = vmatpush1.bf16.msra.mxu0 %v860
          %877 = vmatprep.subr.bf16.mxu0 0
          %878 = vmatpush1.bf16.msra.mxu0 %v859
          %879 = vmatprep.subr.bf16.mxu0 0
          %880 = vmatpush1.bf16.msra.mxu0 %v858
          %881 = vmatprep.subr.bf16.mxu0 0
          %882 = vmatpush1.bf16.msra.mxu0 %v857
          %883 = vmatprep.subr.bf16.mxu0 0
          %884 = vmatpush1.bf16.msra.mxu0 %v856
          %885 = vmatprep.subr.bf16.mxu0 0
          %886 = vmatpush1.bf16.msra.mxu0 %v855
          %887 = vmatprep.subr.bf16.mxu0 0
          %888 = vmatpush2.bf16.msra.mxu0 0
          %889 = vmatprep.subr.bf16.mxu0 0
          %890 = vmatpush2.bf16.msra.mxu0 0
          %891 = vmatprep.subr.bf16.mxu0 0
          %892 = vmatpush2.bf16.msra.mxu0 0
          %893 = vmatprep.subr.bf16.mxu0 0
          %894 = vmatpush2.bf16.msra.mxu0 0
          %895 = vmatprep.subr.bf16.mxu0 0
          %896 = vmatpush2.bf16.msra.mxu0 0
          %897 = vmatprep.subr.bf16.mxu0 0
          %898 = vmatpush2.bf16.msra.mxu0 0
          %899 = vmatprep.subr.bf16.mxu0 0
          %900 = vmatpush2.bf16.msra.mxu0 0
          %901 = vmatprep.subr.bf16.mxu0 0
          %902 = vmatpush2.bf16.msra.mxu0 0
          %903 = vmatprep.mubr.bf16.mxu0 0
          %904 = vmatmul.mubr.bf16.gmra.mxu0 %v799
          %v905 = vpop.f32.mrf.mxu0
          %v906 = vadd.f32 %v821, %v905
          %v907 = vpop.f32.mrf.mxu0
          %v908 = vpop.f32.mrf.mxu0
          %v909 = vpop.f32.mrf.mxu0
          %910 = vdwg.mxu0
          %911 = vst [vmem:[#allocation4] sm:$0x3] %v906
        $region89: #{cnn1d_forward.5} parent=76 // pred_fallthru
          _
        // Predicated region
        $region90: #{cnn1d_forward.5} parent=76 // pred_check
          %p912 = pneg %p145
        $region91: #{cnn1d_forward.5} parent=76 // pred_check_branch
          %914 = sbr.rel (%p912) target = $region93
        $region92: #{cnn1d_forward.5} parent=76 // pred_region
          %s916 = ssub.s32 32, 32
          %917 = vsyncadd [#allocation5], %s916
          %s919 = sshll.u32 [#allocation4], 4
          %s920 = int_to_ptr.vmem [resolvable:$true] %s919
          %922 = dma.vmem_to_hbm [thread:$0]  %s920, 32, %s5, [#allocation5]
        $region93: #{cnn1d_forward.5} parent=76 // pred_fallthru
          _
        // Predicated region
        $region94: #{cnn1d_forward.5} parent=76 // pred_check
          %p923 = pneg %p145
        $region95: #{cnn1d_forward.5} parent=76 // pred_check_branch
          %925 = sbr.rel (%p923) target = $region97
        $region96: #{cnn1d_forward.5} parent=76 // pred_region
          %926 = dma.done [#allocation5], 32
        $region97: #{cnn1d_forward.5} parent=76 // pred_fallthru
          _
      $region77: #{cnn1d_forward.5} parent=5 // pred_fallthru
        _
      %p927 = scmp.le.s32.totalorder 2, %s12
      // Predicated region
      $region98: #{cnn1d_forward.5} parent=5 // pred_check
        %p928 = pneg %p927
      $region99: #{cnn1d_forward.5} parent=5 // pred_check_branch
        %930 = sbr.rel (%p928) target = $region101
      $region100: #{cnn1d_forward.5} parent=5 // pred_region
        %s931 = ssub.s32 %s12, 2
      $region101: #{cnn1d_forward.5} parent=5 // pred_fallthru
        _
    $region6: #{cnn1d_forward.5} parent=1 // loop_footer
      %s16 = sadd.s32 1, %s12
    $region7: #{cnn1d_forward.5} parent=1 // loop_footer_branch
      %11 = sbr.rel target = $region3
    $region8: #{cnn1d_forward.5} parent=1 // loop_exit
      _
    %932 = vsyncpa [#allocation5], 1
    %s933 = scalar_lea.sflag [#allocation5], 1
    %934 = vsyncpa %s933, 1

// kernel: cnn1d_forward.4
$region0: #{cnn1d_forward.4}
  #allocation0 [shape = 'u32[]', space=smem, size = 0x4, offset = 0x4, fixed_abs, tag = 'smem constant byte address 0x4 - core index']
  #allocation1 [shape = 'u32[144,128]{1,0:T(1,128)}', space=vmem, size = 0x12000, scoped, tag = 'internal scratch']
  %s0 = inlined_call_operand.vmem [shape: bf16[2,192,16], index: 0, kind: input, shape index: {}]
  %s1 = inlined_call_operand.vmem [shape: bf16[32,144], index: 1, kind: input, shape index: {}]
  %s2 = inlined_call_operand.vmem [shape: f32[32,1], index: 2, kind: input, shape index: {}]
  %s3 = inlined_call_operand.vmem [shape: bf16[2,32,16], index: 3, kind: output, shape index: {}]
  %s4 = sld [smem:[#allocation0]]
  $region22: #{cnn1d_forward.4} parent=0
    _
  %s6 = ssub.s32 1, %s4
  %s7 = scalar_select 0, %s6, %s4
  // Predicated region
  $region2: #{cnn1d_forward.4} parent=0 // pred_check
    _
  $region3: #{cnn1d_forward.4} parent=0 // pred_check_branch
    %9 = sbr.rel (0) target = $region5
  $region4: #{cnn1d_forward.4} parent=0 // pred_region
    _
  $region5: #{cnn1d_forward.4} parent=0 // pred_fallthru
    _
  // Predicated region
  $region6: #{cnn1d_forward.4} parent=0 // pred_check
    _
  $region7: #{cnn1d_forward.4} parent=0 // pred_check_branch
    %11 = sbr.rel (0) target = $region9
  $region8: #{cnn1d_forward.4} parent=0 // pred_region
    _
  $region9: #{cnn1d_forward.4} parent=0 // pred_fallthru
    _
  // Predicated region
  $region10: #{cnn1d_forward.4} parent=0 // pred_check
    _
  $region11: #{cnn1d_forward.4} parent=0 // pred_check_branch
    %13 = sbr.rel (0) target = $region13
  $region12: #{cnn1d_forward.4} parent=0 // pred_region
    _
  $region13: #{cnn1d_forward.4} parent=0 // pred_fallthru
    _
  %v15 = vld [vmem:[%s1] sm:$0xff]
  %v16 = vld [vmem:[%s1 + $0x8] sm:$0xff]
  %v17 = vld [vmem:[%s1 + $0x10] sm:$0xff]
  %v18 = vld [vmem:[%s1 + $0x18] sm:$0xff]
  %v19 = vld [vmem:[%s2] sm:$0xff]
  %v20 = vld [vmem:[%s2 + $0x8] sm:$0xff]
  %v21 = vld [vmem:[%s2 + $0x10] sm:$0xff]
  %v22 = vld [vmem:[%s2 + $0x18] sm:$0xff]
  %v23 = vld [vmem:[%s0] sm:$0xf]
  %v24 = vld [vmem:[%s0 + $0x4] sm:$0xf]
  %v25 = vld [vmem:[%s0 + $0x8] sm:$0xf]
  %v26 = vld [vmem:[%s0 + $0xc] sm:$0xf]
  %v27 = vld [vmem:[%s0 + $0x10] sm:$0xf]
  %v28 = vld [vmem:[%s0 + $0x14] sm:$0xf]
  %v29 = vld [vmem:[%s0 + $0x18] sm:$0xf]
  %v30 = vld [vmem:[%s0 + $0x1c] sm:$0xf]
  %v31 = vld [vmem:[%s0 + $0x20] sm:$0xf]
  %v32 = vld [vmem:[%s0 + $0x24] sm:$0xf]
  %v33 = vld [vmem:[%s0 + $0x28] sm:$0xf]
  %v34 = vld [vmem:[%s0 + $0x2c] sm:$0xf]
  %v35 = vld [vmem:[%s0 + $0x30] sm:$0xf]
  %v36 = vld [vmem:[%s0 + $0x34] sm:$0xf]
  %v37 = vld [vmem:[%s0 + $0x38] sm:$0xf]
  %v38 = vld [vmem:[%s0 + $0x3c] sm:$0xf]
  %v39 = vld [vmem:[%s0 + $0x40] sm:$0xf]
  %v40 = vld [vmem:[%s0 + $0x44] sm:$0xf]
  %42 = vset.pattern.permute.xlu0 0
  %43 = vperm.xlu0 %42, %v19
  %v44 = vpop.permute.xlu0 %43
  %47 = vset.pattern.permute.xlu0 0
  %48 = vperm.xlu0 %47, %v20
  %v49 = vpop.permute.xlu0 %48
  %52 = vset.pattern.permute.xlu0 0
  %53 = vperm.xlu0 %52, %v21
  %v54 = vpop.permute.xlu0 %53
  %57 = vset.pattern.permute.xlu0 0
  %58 = vperm.xlu0 %57, %v22
  %v59 = vpop.permute.xlu0 %58
  %v65 = vunpack.c.l.b16 %v15
  %v66 = vunpack.c.h.b16 %v15
  %v67 = vunpack.c.l.b16 %v16
  %v68 = vunpack.c.h.b16 %v16
  %v69 = vunpack.c.l.b16 %v17
  %v70 = vunpack.c.h.b16 %v17
  %v71 = vunpack.c.l.b16 %v18
  %v72 = vunpack.c.h.b16 %v18
  %v73 = vpack.c.b16 %v67, %v65
  %v74 = vpack.c.b16 %v68, %v66
  %v75 = vpack.c.b16 %v71, %v69
  %v76 = vpack.c.b16 %v72, %v70
  %v97 = vunpack.c.l.b16 %v23
  %v98 = vunpack.c.l.b16 %v24
  %v99 = vunpack.c.l.b16 %v25
  %v100 = vunpack.c.l.b16 %v26
  %v101 = vunpack.c.l.b16 %v27
  %v102 = vunpack.c.l.b16 %v28
  %v103 = vunpack.c.l.b16 %v29
  %v104 = vunpack.c.l.b16 %v30
  %v105 = vunpack.c.l.b16 %v31
  %v106 = vunpack.c.l.b16 %v32
  %v107 = vunpack.c.l.b16 %v33
  %v108 = vunpack.c.l.b16 %v34
  %v109 = vunpack.c.l.b16 %v35
  %v110 = vunpack.c.l.b16 %v36
  %v111 = vunpack.c.l.b16 %v37
  %v112 = vunpack.c.l.b16 %v38
  %v113 = vunpack.c.l.b16 %v39
  %v114 = vunpack.c.l.b16 %v40
  %v115 = vpack.c.b16 %v98, %v97
  %v116 = vpack.c.b16 %v100, %v99
  %v117 = vpack.c.b16 %v102, %v101
  %v118 = vpack.c.b16 %v104, %v103
  %v119 = vpack.c.b16 %v106, %v105
  %v120 = vpack.c.b16 %v108, %v107
  %v121 = vpack.c.b16 %v110, %v109
  %v122 = vpack.c.b16 %v112, %v111
  %v123 = vpack.c.b16 %v114, %v113
  %vm133 = vcmask 130048
  %v135 = vsel %vm133, %v74, 0
  %v138 = vsel %vm133, %v76, 0
  %140 = vmatprep.subr.bf16.mxu0 0
  %141 = vmatpush1.bf16.msra.mxu0 %v122
  %142 = vmatprep.subr.bf16.mxu0 0
  %143 = vmatpush1.bf16.msra.mxu0 %v121
  %144 = vmatprep.subr.bf16.mxu0 0
  %145 = vmatpush1.bf16.msra.mxu0 %v120
  %146 = vmatprep.subr.bf16.mxu0 0
  %147 = vmatpush1.bf16.msra.mxu0 %v119
  %148 = vmatprep.subr.bf16.mxu0 0
  %149 = vmatpush1.bf16.msra.mxu0 %v118
  %150 = vmatprep.subr.bf16.mxu0 0
  %151 = vmatpush1.bf16.msra.mxu0 %v117
  %152 = vmatprep.subr.bf16.mxu0 0
  %153 = vmatpush1.bf16.msra.mxu0 %v116
  %154 = vmatprep.subr.bf16.mxu0 0
  %155 = vmatpush1.bf16.msra.mxu0 %v115
  %156 = vmatprep.subr.bf16.mxu0 0
  %157 = vmatpush2.bf16.msra.mxu0 0
  %158 = vmatprep.subr.bf16.mxu0 0
  %159 = vmatpush2.bf16.msra.mxu0 0
  %160 = vmatprep.subr.bf16.mxu0 0
  %161 = vmatpush2.bf16.msra.mxu0 0
  %162 = vmatprep.subr.bf16.mxu0 0
  %163 = vmatpush2.bf16.msra.mxu0 0
  %164 = vmatprep.subr.bf16.mxu0 0
  %165 = vmatpush2.bf16.msra.mxu0 0
  %166 = vmatprep.subr.bf16.mxu0 0
  %167 = vmatpush2.bf16.msra.mxu0 0
  %168 = vmatprep.subr.bf16.mxu0 0
  %169 = vmatpush2.bf16.msra.mxu0 0
  %170 = vmatprep.subr.bf16.mxu0 0
  %171 = vmatpush2.bf16.msra.mxu0 %v123
  %172 = vmatprep.mubr.bf16.mxu0 %v135
  %173 = vmatmul.mubr.bf16.gmra.mxu0 %v73
  %v174 = vpop.f32.mrf.mxu0
  %v175 = vadd.f32 %v44, %v174
  %v176 = vpop.f32.mrf.mxu0
  %v177 = vpop.f32.mrf.mxu0
  %v178 = vadd.f32 %v49, %v177
  %v179 = vpop.f32.mrf.mxu0
  %180 = vmatprep.mubr.bf16.mxu0 %v138
  %181 = vmatmul.mubr.bf16.gmra.mxu0 %v75
  %v182 = vpop.f32.mrf.mxu0
  %v183 = vadd.f32 %v54, %v182
  %v184 = vpop.f32.mrf.mxu0
  %v185 = vpop.f32.mrf.mxu0
  %v186 = vadd.f32 %v59, %v185
  %v187 = vpop.f32.mrf.mxu0
  %188 = vdwg.mxu0
  %v189 = vld [vmem:[%s0 + $0x8] sm:$0xf]
  %v190 = vld [vmem:[%s0 + $0xc] sm:$0xf]
  %v191 = vld [vmem:[%s0 + $0x10] sm:$0xf]
  %v192 = vld [vmem:[%s0 + $0x14] sm:$0xf]
  %v193 = vld [vmem:[%s0 + $0x18] sm:$0xf]
  %v194 = vld [vmem:[%s0 + $0x1c] sm:$0xf]
  %v195 = vld [vmem:[%s0 + $0x20] sm:$0xf]
  %v196 = vld [vmem:[%s0 + $0x24] sm:$0xf]
  %v197 = vld [vmem:[%s0 + $0x28] sm:$0xf]
  %v198 = vld [vmem:[%s0 + $0x2c] sm:$0xf]
  %v199 = vld [vmem:[%s0 + $0x30] sm:$0xf]
  %v200 = vld [vmem:[%s0 + $0x34] sm:$0xf]
  %v201 = vld [vmem:[%s0 + $0x38] sm:$0xf]
  %v202 = vld [vmem:[%s0 + $0x3c] sm:$0xf]
  %v203 = vld [vmem:[%s0 + $0x40] sm:$0xf]
  %v204 = vld [vmem:[%s0 + $0x44] sm:$0xf]
  %v205 = vld [vmem:[%s0 + $0x48] sm:$0xf]
  %v206 = vld [vmem:[%s0 + $0x4c] sm:$0xf]
  %v225 = vunpack.c.l.b16 %v189
  %v226 = vunpack.c.l.b16 %v190
  %v227 = vunpack.c.l.b16 %v191
  %v228 = vunpack.c.l.b16 %v192
  %v229 = vunpack.c.l.b16 %v193
  %v230 = vunpack.c.l.b16 %v194
  %v231 = vunpack.c.l.b16 %v195
  %v232 = vunpack.c.l.b16 %v196
  %v233 = vunpack.c.l.b16 %v197
  %v234 = vunpack.c.l.b16 %v198
  %v235 = vunpack.c.l.b16 %v199
  %v236 = vunpack.c.l.b16 %v200
  %v237 = vunpack.c.l.b16 %v201
  %v238 = vunpack.c.l.b16 %v202
  %v239 = vunpack.c.l.b16 %v203
  %v240 = vunpack.c.l.b16 %v204
  %v241 = vunpack.c.l.b16 %v205
  %v242 = vunpack.c.l.b16 %v206
  %v243 = vpack.c.b16 %v226, %v225
  %v244 = vpack.c.b16 %v228, %v227
  %v245 = vpack.c.b16 %v230, %v229
  %v246 = vpack.c.b16 %v232, %v231
  %v247 = vpack.c.b16 %v234, %v233
  %v248 = vpack.c.b16 %v236, %v235
  %v249 = vpack.c.b16 %v238, %v237
  %v250 = vpack.c.b16 %v240, %v239
  %v251 = vpack.c.b16 %v242, %v241
  %261 = vmatprep.subr.bf16.mxu0 0
  %262 = vmatpush1.bf16.msra.mxu0 %v250
  %263 = vmatprep.subr.bf16.mxu0 0
  %264 = vmatpush1.bf16.msra.mxu0 %v249
  %265 = vmatprep.subr.bf16.mxu0 0
  %266 = vmatpush1.bf16.msra.mxu0 %v248
  %267 = vmatprep.subr.bf16.mxu0 0
  %268 = vmatpush1.bf16.msra.mxu0 %v247
  %269 = vmatprep.subr.bf16.mxu0 0
  %270 = vmatpush1.bf16.msra.mxu0 %v246
  %271 = vmatprep.subr.bf16.mxu0 0
  %272 = vmatpush1.bf16.msra.mxu0 %v245
  %273 = vmatprep.subr.bf16.mxu0 0
  %274 = vmatpush1.bf16.msra.mxu0 %v244
  %275 = vmatprep.subr.bf16.mxu0 0
  %276 = vmatpush1.bf16.msra.mxu0 %v243
  %277 = vmatprep.subr.bf16.mxu0 0
  %278 = vmatpush2.bf16.msra.mxu0 0
  %279 = vmatprep.subr.bf16.mxu0 0
  %280 = vmatpush2.bf16.msra.mxu0 0
  %281 = vmatprep.subr.bf16.mxu0 0
  %282 = vmatpush2.bf16.msra.mxu0 0
  %283 = vmatprep.subr.bf16.mxu0 0
  %284 = vmatpush2.bf16.msra.mxu0 0
  %285 = vmatprep.subr.bf16.mxu0 0
  %286 = vmatpush2.bf16.msra.mxu0 0
  %287 = vmatprep.subr.bf16.mxu0 0
  %288 = vmatpush2.bf16.msra.mxu0 0
  %289 = vmatprep.subr.bf16.mxu0 0
  %290 = vmatpush2.bf16.msra.mxu0 0
  %291 = vmatprep.subr.bf16.mxu0 0
  %292 = vmatpush2.bf16.msra.mxu0 %v251
  %293 = vmatprep.mubr.bf16.mxu0 %v135
  %294 = vmatmul.mubr.bf16.gmra.mxu0 %v73
  %v295 = vpop.f32.mrf.mxu0
  %v296 = vadd.f32 %v44, %v295
  %v297 = vpop.f32.mrf.mxu0
  %v298 = vpop.f32.mrf.mxu0
  %v299 = vadd.f32 %v49, %v298
  %v300 = vpop.f32.mrf.mxu0
  %301 = vmatprep.mubr.bf16.mxu0 %v138
  %302 = vmatmul.mubr.bf16.gmra.mxu0 %v75
  %v303 = vpop.f32.mrf.mxu0
  %v304 = vadd.f32 %v54, %v303
  %v305 = vpop.f32.mrf.mxu0
  %v306 = vpop.f32.mrf.mxu0
  %v307 = vadd.f32 %v59, %v306
  %v308 = vpop.f32.mrf.mxu0
  %309 = vdwg.mxu0
  %v310 = vmax.f32 %v175, %v296
  %v311 = vmax.f32 %v178, %v299
  %v312 = vmax.f32 %v183, %v304
  %v313 = vmax.f32 %v186, %v307
  %v314 = vld [vmem:[%s0 + $0x10] sm:$0xf]
  %v315 = vld [vmem:[%s0 + $0x14] sm:$0xf]
  %v316 = vld [vmem:[%s0 + $0x18] sm:$0xf]
  %v317 = vld [vmem:[%s0 + $0x1c] sm:$0xf]
  %v318 = vld [vmem:[%s0 + $0x20] sm:$0xf]
  %v319 = vld [vmem:[%s0 + $0x24] sm:$0xf]
  %v320 = vld [vmem:[%s0 + $0x28] sm:$0xf]
  %v321 = vld [vmem:[%s0 + $0x2c] sm:$0xf]
  %v322 = vld [vmem:[%s0 + $0x30] sm:$0xf]
  %v323 = vld [vmem:[%s0 + $0x34] sm:$0xf]
  %v324 = vld [vmem:[%s0 + $0x38] sm:$0xf]
  %v325 = vld [vmem:[%s0 + $0x3c] sm:$0xf]
  %v326 = vld [vmem:[%s0 + $0x40] sm:$0xf]
  %v327 = vld [vmem:[%s0 + $0x44] sm:$0xf]
  %v328 = vld [vmem:[%s0 + $0x48] sm:$0xf]
  %v329 = vld [vmem:[%s0 + $0x4c] sm:$0xf]
  %v330 = vld [vmem:[%s0 + $0x50] sm:$0xf]
  %v331 = vld [vmem:[%s0 + $0x54] sm:$0xf]
  %v350 = vunpack.c.l.b16 %v314
  %v351 = vunpack.c.l.b16 %v315
  %v352 = vunpack.c.l.b16 %v316
  %v353 = vunpack.c.l.b16 %v317
  %v354 = vunpack.c.l.b16 %v318
  %v355 = vunpack.c.l.b16 %v319
  %v356 = vunpack.c.l.b16 %v320
  %v357 = vunpack.c.l.b16 %v321
  %v358 = vunpack.c.l.b16 %v322
  %v359 = vunpack.c.l.b16 %v323
  %v360 = vunpack.c.l.b16 %v324
  %v361 = vunpack.c.l.b16 %v325
  %v362 = vunpack.c.l.b16 %v326
  %v363 = vunpack.c.l.b16 %v327
  %v364 = vunpack.c.l.b16 %v328
  %v365 = vunpack.c.l.b16 %v329
  %v366 = vunpack.c.l.b16 %v330
  %v367 = vunpack.c.l.b16 %v331
  %v368 = vpack.c.b16 %v351, %v350
  %v369 = vpack.c.b16 %v353, %v352
  %v370 = vpack.c.b16 %v355, %v354
  %v371 = vpack.c.b16 %v357, %v356
  %v372 = vpack.c.b16 %v359, %v358
  %v373 = vpack.c.b16 %v361, %v360
  %v374 = vpack.c.b16 %v363, %v362
  %v375 = vpack.c.b16 %v365, %v364
  %v376 = vpack.c.b16 %v367, %v366
  %386 = vmatprep.subr.bf16.mxu0 0
  %387 = vmatpush1.bf16.msra.mxu0 %v375
  %388 = vmatprep.subr.bf16.mxu0 0
  %389 = vmatpush1.bf16.msra.mxu0 %v374
  %390 = vmatprep.subr.bf16.mxu0 0
  %391 = vmatpush1.bf16.msra.mxu0 %v373
  %392 = vmatprep.subr.bf16.mxu0 0
  %393 = vmatpush1.bf16.msra.mxu0 %v372
  %394 = vmatprep.subr.bf16.mxu0 0
  %395 = vmatpush1.bf16.msra.mxu0 %v371
  %396 = vmatprep.subr.bf16.mxu0 0
  %397 = vmatpush1.bf16.msra.mxu0 %v370
  %398 = vmatprep.subr.bf16.mxu0 0
  %399 = vmatpush1.bf16.msra.mxu0 %v369
  %400 = vmatprep.subr.bf16.mxu0 0
  %401 = vmatpush1.bf16.msra.mxu0 %v368
  %402 = vmatprep.subr.bf16.mxu0 0
  %403 = vmatpush2.bf16.msra.mxu0 0
  %404 = vmatprep.subr.bf16.mxu0 0
  %405 = vmatpush2.bf16.msra.mxu0 0
  %406 = vmatprep.subr.bf16.mxu0 0
  %407 = vmatpush2.bf16.msra.mxu0 0
  %408 = vmatprep.subr.bf16.mxu0 0
  %409 = vmatpush2.bf16.msra.mxu0 0
  %410 = vmatprep.subr.bf16.mxu0 0
  %411 = vmatpush2.bf16.msra.mxu0 0
  %412 = vmatprep.subr.bf16.mxu0 0
  %413 = vmatpush2.bf16.msra.mxu0 0
  %414 = vmatprep.subr.bf16.mxu0 0
  %415 = vmatpush2.bf16.msra.mxu0 0
  %416 = vmatprep.subr.bf16.mxu0 0
  %417 = vmatpush2.bf16.msra.mxu0 %v376
  %418 = vmatprep.mubr.bf16.mxu0 %v135
  %419 = vmatmul.mubr.bf16.gmra.mxu0 %v73
  %v420 = vpop.f32.mrf.mxu0
  %v421 = vadd.f32 %v44, %v420
  %v422 = vpop.f32.mrf.mxu0
  %v423 = vpop.f32.mrf.mxu0
  %v424 = vadd.f32 %v49, %v423
  %v425 = vpop.f32.mrf.mxu0
  %426 = vmatprep.mubr.bf16.mxu0 %v138
  %427 = vmatmul.mubr.bf16.gmra.mxu0 %v75
  %v428 = vpop.f32.mrf.mxu0
  %v429 = vadd.f32 %v54, %v428
  %v430 = vpop.f32.mrf.mxu0
  %v431 = vpop.f32.mrf.mxu0
  %v432 = vadd.f32 %v59, %v431
  %v433 = vpop.f32.mrf.mxu0
  %434 = vdwg.mxu0
  %v435 = vmax.f32 %v310, %v421
  %v436 = vmax.f32 %v311, %v424
  %v437 = vmax.f32 %v312, %v429
  %v438 = vmax.f32 %v313, %v432
  %v439 = vld [vmem:[%s0 + $0x18] sm:$0xf]
  %v440 = vld [vmem:[%s0 + $0x1c] sm:$0xf]
  %v441 = vld [vmem:[%s0 + $0x20] sm:$0xf]
  %v442 = vld [vmem:[%s0 + $0x24] sm:$0xf]
  %v443 = vld [vmem:[%s0 + $0x28] sm:$0xf]
  %v444 = vld [vmem:[%s0 + $0x2c] sm:$0xf]
  %v445 = vld [vmem:[%s0 + $0x30] sm:$0xf]
  %v446 = vld [vmem:[%s0 + $0x34] sm:$0xf]
  %v447 = vld [vmem:[%s0 + $0x38] sm:$0xf]
  %v448 = vld [vmem:[%s0 + $0x3c] sm:$0xf]
  %v449 = vld [vmem:[%s0 + $0x40] sm:$0xf]
  %v450 = vld [vmem:[%s0 + $0x44] sm:$0xf]
  %v451 = vld [vmem:[%s0 + $0x48] sm:$0xf]
  %v452 = vld [vmem:[%s0 + $0x4c] sm:$0xf]
  %v453 = vld [vmem:[%s0 + $0x50] sm:$0xf]
  %v454 = vld [vmem:[%s0 + $0x54] sm:$0xf]
  %v455 = vld [vmem:[%s0 + $0x58] sm:$0xf]
  %v456 = vld [vmem:[%s0 + $0x5c] sm:$0xf]
  %v475 = vunpack.c.l.b16 %v439
  %v476 = vunpack.c.l.b16 %v440
  %v477 = vunpack.c.l.b16 %v441
  %v478 = vunpack.c.l.b16 %v442
  %v479 = vunpack.c.l.b16 %v443
  %v480 = vunpack.c.l.b16 %v444
  %v481 = vunpack.c.l.b16 %v445
  %v482 = vunpack.c.l.b16 %v446
  %v483 = vunpack.c.l.b16 %v447
  %v484 = vunpack.c.l.b16 %v448
  %v485 = vunpack.c.l.b16 %v449
  %v486 = vunpack.c.l.b16 %v450
  %v487 = vunpack.c.l.b16 %v451
  %v488 = vunpack.c.l.b16 %v452
  %v489 = vunpack.c.l.b16 %v453
  %v490 = vunpack.c.l.b16 %v454
  %v491 = vunpack.c.l.b16 %v455
  %v492 = vunpack.c.l.b16 %v456
  %v493 = vpack.c.b16 %v476, %v475
  %v494 = vpack.c.b16 %v478, %v477
  %v495 = vpack.c.b16 %v480, %v479
  %v496 = vpack.c.b16 %v482, %v481
  %v497 = vpack.c.b16 %v484, %v483
  %v498 = vpack.c.b16 %v486, %v485
  %v499 = vpack.c.b16 %v488, %v487
  %v500 = vpack.c.b16 %v490, %v489
  %v501 = vpack.c.b16 %v492, %v491
  %511 = vmatprep.subr.bf16.mxu0 0
  %512 = vmatpush1.bf16.msra.mxu0 %v500
  %513 = vmatprep.subr.bf16.mxu0 0
  %514 = vmatpush1.bf16.msra.mxu0 %v499
  %515 = vmatprep.subr.bf16.mxu0 0
  %516 = vmatpush1.bf16.msra.mxu0 %v498
  %517 = vmatprep.subr.bf16.mxu0 0
  %518 = vmatpush1.bf16.msra.mxu0 %v497
  %519 = vmatprep.subr.bf16.mxu0 0
  %520 = vmatpush1.bf16.msra.mxu0 %v496
  %521 = vmatprep.subr.bf16.mxu0 0
  %522 = vmatpush1.bf16.msra.mxu0 %v495
  %523 = vmatprep.subr.bf16.mxu0 0
  %524 = vmatpush1.bf16.msra.mxu0 %v494
  %525 = vmatprep.subr.bf16.mxu0 0
  %526 = vmatpush1.bf16.msra.mxu0 %v493
  %527 = vmatprep.subr.bf16.mxu0 0
  %528 = vmatpush2.bf16.msra.mxu0 0
  %529 = vmatprep.subr.bf16.mxu0 0
  %530 = vmatpush2.bf16.msra.mxu0 0
  %531 = vmatprep.subr.bf16.mxu0 0
  %532 = vmatpush2.bf16.msra.mxu0 0
  %533 = vmatprep.subr.bf16.mxu0 0
  %534 = vmatpush2.bf16.msra.mxu0 0
  %535 = vmatprep.subr.bf16.mxu0 0
  %536 = vmatpush2.bf16.msra.mxu0 0
  %537 = vmatprep.subr.bf16.mxu0 0
  %538 = vmatpush2.bf16.msra.mxu0 0
  %539 = vmatprep.subr.bf16.mxu0 0
  %540 = vmatpush2.bf16.msra.mxu0 0
  %541 = vmatprep.subr.bf16.mxu0 0
  %542 = vmatpush2.bf16.msra.mxu0 %v501
  %543 = vmatprep.mubr.bf16.mxu0 %v135
  %544 = vmatmul.mubr.bf16.gmra.mxu0 %v73
  %v545 = vpop.f32.mrf.mxu0
  %v546 = vadd.f32 %v44, %v545
  %v547 = vpop.f32.mrf.mxu0
  %v548 = vpop.f32.mrf.mxu0
  %v549 = vadd.f32 %v49, %v548
  %v550 = vpop.f32.mrf.mxu0
  %551 = vmatprep.mubr.bf16.mxu0 %v138
  %552 = vmatmul.mubr.bf16.gmra.mxu0 %v75
  %v553 = vpop.f32.mrf.mxu0
  %v554 = vadd.f32 %v54, %v553
  %v555 = vpop.f32.mrf.mxu0
  %v556 = vpop.f32.mrf.mxu0
  %v557 = vadd.f32 %v59, %v556
  %v558 = vpop.f32.mrf.mxu0
  %559 = vdwg.mxu0
  %v560 = vmax.f32 %v435, %v546
  %v561 = vmax.f32 %v436, %v549
  %v562 = vmax.f32 %v437, %v554
  %v563 = vmax.f32 %v438, %v557
  %v564 = vmax.f32 %v560, 0.0
  %v565 = vmax.f32 %v561, 0.0
  %v566 = vmax.f32 %v562, 0.0
  %v567 = vmax.f32 %v563, 0.0
  %v568 = vpack.c.bf16 %v565, %v564
  %v569 = vpack.c.bf16 %v567, %v566
  %v572 = vunpack.c.l.b16 %v568
  %v573 = vunpack.c.h.b16 %v568
  %v574 = vunpack.c.l.b16 %v569
  %v575 = vunpack.c.h.b16 %v569
  %v576 = vpack.c.b16 %v572, %v572
  %v577 = vpack.c.b16 %v573, %v573
  %v578 = vpack.c.b16 %v574, %v574
  %v579 = vpack.c.b16 %v575, %v575
  %vm584 = vcmask 125952
  %585 = vst.msk [vmem:[%s3] sm:$0xf] %vm584, %v576
  %586 = vst.msk [vmem:[%s3 + $0x4] sm:$0xf] %vm584, %v577
  %587 = vst.msk [vmem:[%s3 + $0x8] sm:$0xf] %vm584, %v578
  %588 = vst.msk [vmem:[%s3 + $0xc] sm:$0xf] %vm584, %v579
  %s589 = scalar_lea.vmem %s0, 96
  %v590 = vld [vmem:[%s589] sm:$0xf]
  %v591 = vld [vmem:[%s589 + $0x4] sm:$0xf]
  %v592 = vld [vmem:[%s589 + $0x8] sm:$0xf]
  %v593 = vld [vmem:[%s589 + $0xc] sm:$0xf]
  %v594 = vld [vmem:[%s589 + $0x10] sm:$0xf]
  %v595 = vld [vmem:[%s589 + $0x14] sm:$0xf]
  %v596 = vld [vmem:[%s589 + $0x18] sm:$0xf]
  %v597 = vld [vmem:[%s589 + $0x1c] sm:$0xf]
  %v598 = vld [vmem:[%s589 + $0x20] sm:$0xf]
  %v599 = vld [vmem:[%s589 + $0x24] sm:$0xf]
  %v600 = vld [vmem:[%s589 + $0x28] sm:$0xf]
  %v601 = vld [vmem:[%s589 + $0x2c] sm:$0xf]
  %v602 = vld [vmem:[%s589 + $0x30] sm:$0xf]
  %v603 = vld [vmem:[%s589 + $0x34] sm:$0xf]
  %v604 = vld [vmem:[%s589 + $0x38] sm:$0xf]
  %v605 = vld [vmem:[%s589 + $0x3c] sm:$0xf]
  %v606 = vld [vmem:[%s589 + $0x40] sm:$0xf]
  %v607 = vld [vmem:[%s589 + $0x44] sm:$0xf]
  %v626 = vunpack.c.l.b16 %v590
  %v627 = vunpack.c.l.b16 %v591
  %v628 = vunpack.c.l.b16 %v592
  %v629 = vunpack.c.l.b16 %v593
  %v630 = vunpack.c.l.b16 %v594
  %v631 = vunpack.c.l.b16 %v595
  %v632 = vunpack.c.l.b16 %v596
  %v633 = vunpack.c.l.b16 %v597
  %v634 = vunpack.c.l.b16 %v598
  %v635 = vunpack.c.l.b16 %v599
  %v636 = vunpack.c.l.b16 %v600
  %v637 = vunpack.c.l.b16 %v601
  %v638 = vunpack.c.l.b16 %v602
  %v639 = vunpack.c.l.b16 %v603
  %v640 = vunpack.c.l.b16 %v604
  %v641 = vunpack.c.l.b16 %v605
  %v642 = vunpack.c.l.b16 %v606
  %v643 = vunpack.c.l.b16 %v607
  %v644 = vpack.c.b16 %v627, %v626
  %v645 = vpack.c.b16 %v629, %v628
  %v646 = vpack.c.b16 %v631, %v630
  %v647 = vpack.c.b16 %v633, %v632
  %v648 = vpack.c.b16 %v635, %v634
  %v649 = vpack.c.b16 %v637, %v636
  %v650 = vpack.c.b16 %v639, %v638
  %v651 = vpack.c.b16 %v641, %v640
  %v652 = vpack.c.b16 %v643, %v642
  %662 = vmatprep.subr.bf16.mxu0 0
  %663 = vmatpush1.bf16.msra.mxu0 %v651
  %664 = vmatprep.subr.bf16.mxu0 0
  %665 = vmatpush1.bf16.msra.mxu0 %v650
  %666 = vmatprep.subr.bf16.mxu0 0
  %667 = vmatpush1.bf16.msra.mxu0 %v649
  %668 = vmatprep.subr.bf16.mxu0 0
  %669 = vmatpush1.bf16.msra.mxu0 %v648
  %670 = vmatprep.subr.bf16.mxu0 0
  %671 = vmatpush1.bf16.msra.mxu0 %v647
  %672 = vmatprep.subr.bf16.mxu0 0
  %673 = vmatpush1.bf16.msra.mxu0 %v646
  %674 = vmatprep.subr.bf16.mxu0 0
  %675 = vmatpush1.bf16.msra.mxu0 %v645
  %676 = vmatprep.subr.bf16.mxu0 0
  %677 = vmatpush1.bf16.msra.mxu0 %v644
  %678 = vmatprep.subr.bf16.mxu0 0
  %679 = vmatpush2.bf16.msra.mxu0 0
  %680 = vmatprep.subr.bf16.mxu0 0
  %681 = vmatpush2.bf16.msra.mxu0 0
  %682 = vmatprep.subr.bf16.mxu0 0
  %683 = vmatpush2.bf16.msra.mxu0 0
  %684 = vmatprep.subr.bf16.mxu0 0
  %685 = vmatpush2.bf16.msra.mxu0 0
  %686 = vmatprep.subr.bf16.mxu0 0
  %687 = vmatpush2.bf16.msra.mxu0 0
  %688 = vmatprep.subr.bf16.mxu0 0
  %689 = vmatpush2.bf16.msra.mxu0 0
  %690 = vmatprep.subr.bf16.mxu0 0
  %691 = vmatpush2.bf16.msra.mxu0 0
  %692 = vmatprep.subr.bf16.mxu0 0
  %693 = vmatpush2.bf16.msra.mxu0 %v652
  %694 = vmatprep.mubr.bf16.mxu0 %v135
  %695 = vmatmul.mubr.bf16.gmra.mxu0 %v73
  %v696 = vpop.f32.mrf.mxu0
  %v697 = vadd.f32 %v44, %v696
  %v698 = vpop.f32.mrf.mxu0
  %v699 = vpop.f32.mrf.mxu0
  %v700 = vadd.f32 %v49, %v699
  %v701 = vpop.f32.mrf.mxu0
  %702 = vmatprep.mubr.bf16.mxu0 %v138
  %703 = vmatmul.mubr.bf16.gmra.mxu0 %v75
  %v704 = vpop.f32.mrf.mxu0
  %v705 = vadd.f32 %v54, %v704
  %v706 = vpop.f32.mrf.mxu0
  %v707 = vpop.f32.mrf.mxu0
  %v708 = vadd.f32 %v59, %v707
  %v709 = vpop.f32.mrf.mxu0
  %710 = vdwg.mxu0
  %v711 = vld [vmem:[%s589 + $0x8] sm:$0xf]
  %v712 = vld [vmem:[%s589 + $0xc] sm:$0xf]
  %v713 = vld [vmem:[%s589 + $0x10] sm:$0xf]
  %v714 = vld [vmem:[%s589 + $0x14] sm:$0xf]
  %v715 = vld [vmem:[%s589 + $0x18] sm:$0xf]
  %v716 = vld [vmem:[%s589 + $0x1c] sm:$0xf]
  %v717 = vld [vmem:[%s589 + $0x20] sm:$0xf]
  %v718 = vld [vmem:[%s589 + $0x24] sm:$0xf]
  %v719 = vld [vmem:[%s589 + $0x28] sm:$0xf]
  %v720 = vld [vmem:[%s589 + $0x2c] sm:$0xf]
  %v721 = vld [vmem:[%s589 + $0x30] sm:$0xf]
  %v722 = vld [vmem:[%s589 + $0x34] sm:$0xf]
  %v723 = vld [vmem:[%s589 + $0x38] sm:$0xf]
  %v724 = vld [vmem:[%s589 + $0x3c] sm:$0xf]
  %v725 = vld [vmem:[%s589 + $0x40] sm:$0xf]
  %v726 = vld [vmem:[%s589 + $0x44] sm:$0xf]
  %v727 = vld [vmem:[%s589 + $0x48] sm:$0xf]
  %v728 = vld [vmem:[%s589 + $0x4c] sm:$0xf]
  %v747 = vunpack.c.l.b16 %v711
  %v748 = vunpack.c.l.b16 %v712
  %v749 = vunpack.c.l.b16 %v713
  %v750 = vunpack.c.l.b16 %v714
  %v751 = vunpack.c.l.b16 %v715
  %v752 = vunpack.c.l.b16 %v716
  %v753 = vunpack.c.l.b16 %v717
  %v754 = vunpack.c.l.b16 %v718
  %v755 = vunpack.c.l.b16 %v719
  %v756 = vunpack.c.l.b16 %v720
  %v757 = vunpack.c.l.b16 %v721
  %v758 = vunpack.c.l.b16 %v722
  %v759 = vunpack.c.l.b16 %v723
  %v760 = vunpack.c.l.b16 %v724
  %v761 = vunpack.c.l.b16 %v725
  %v762 = vunpack.c.l.b16 %v726
  %v763 = vunpack.c.l.b16 %v727
  %v764 = vunpack.c.l.b16 %v728
  %v765 = vpack.c.b16 %v748, %v747
  %v766 = vpack.c.b16 %v750, %v749
  %v767 = vpack.c.b16 %v752, %v751
  %v768 = vpack.c.b16 %v754, %v753
  %v769 = vpack.c.b16 %v756, %v755
  %v770 = vpack.c.b16 %v758, %v757
  %v771 = vpack.c.b16 %v760, %v759
  %v772 = vpack.c.b16 %v762, %v761
  %v773 = vpack.c.b16 %v764, %v763
  %783 = vmatprep.subr.bf16.mxu0 0
  %784 = vmatpush1.bf16.msra.mxu0 %v772
  %785 = vmatprep.subr.bf16.mxu0 0
  %786 = vmatpush1.bf16.msra.mxu0 %v771
  %787 = vmatprep.subr.bf16.mxu0 0
  %788 = vmatpush1.bf16.msra.mxu0 %v770
  %789 = vmatprep.subr.bf16.mxu0 0
  %790 = vmatpush1.bf16.msra.mxu0 %v769
  %791 = vmatprep.subr.bf16.mxu0 0
  %792 = vmatpush1.bf16.msra.mxu0 %v768
  %793 = vmatprep.subr.bf16.mxu0 0
  %794 = vmatpush1.bf16.msra.mxu0 %v767
  %795 = vmatprep.subr.bf16.mxu0 0
  %796 = vmatpush1.bf16.msra.mxu0 %v766
  %797 = vmatprep.subr.bf16.mxu0 0
  %798 = vmatpush1.bf16.msra.mxu0 %v765
  %799 = vmatprep.subr.bf16.mxu0 0
  %800 = vmatpush2.bf16.msra.mxu0 0
  %801 = vmatprep.subr.bf16.mxu0 0
  %802 = vmatpush2.bf16.msra.mxu0 0
  %803 = vmatprep.subr.bf16.mxu0 0
  %804 = vmatpush2.bf16.msra.mxu0 0
  %805 = vmatprep.subr.bf16.mxu0 0
  %806 = vmatpush2.bf16.msra.mxu0 0
  %807 = vmatprep.subr.bf16.mxu0 0
  %808 = vmatpush2.bf16.msra.mxu0 0
  %809 = vmatprep.subr.bf16.mxu0 0
  %810 = vmatpush2.bf16.msra.mxu0 0
  %811 = vmatprep.subr.bf16.mxu0 0
  %812 = vmatpush2.bf16.msra.mxu0 0
  %813 = vmatprep.subr.bf16.mxu0 0
  %814 = vmatpush2.bf16.msra.mxu0 %v773
  %815 = vmatprep.mubr.bf16.mxu0 %v135
  %816 = vmatmul.mubr.bf16.gmra.mxu0 %v73
  %v817 = vpop.f32.mrf.mxu0
  %v818 = vadd.f32 %v44, %v817
  %v819 = vpop.f32.mrf.mxu0
  %v820 = vpop.f32.mrf.mxu0
  %v821 = vadd.f32 %v49, %v820
  %v822 = vpop.f32.mrf.mxu0
  %823 = vmatprep.mubr.bf16.mxu0 %v138
  %824 = vmatmul.mubr.bf16.gmra.mxu0 %v75
  %v825 = vpop.f32.mrf.mxu0
  %v826 = vadd.f32 %v54, %v825
  %v827 = vpop.f32.mrf.mxu0
  %v828 = vpop.f32.mrf.mxu0
  %v829 = vadd.f32 %v59, %v828
  %v830 = vpop.f32.mrf.mxu0
  %831 = vdwg.mxu0
  %v832 = vmax.f32 %v697, %v818
  %v833 = vmax.f32 %v700, %v821
  %v834 = vmax.f32 %v705, %v826
  %v835 = vmax.f32 %v708, %v829
  %v836 = vld [vmem:[%s589 + $0x10] sm:$0xf]
  %v837 = vld [vmem:[%s589 + $0x14] sm:$0xf]
  %v838 = vld [vmem:[%s589 + $0x18] sm:$0xf]
  %v839 = vld [vmem:[%s589 + $0x1c] sm:$0xf]
  %v840 = vld [vmem:[%s589 + $0x20] sm:$0xf]
  %v841 = vld [vmem:[%s589 + $0x24] sm:$0xf]
  %v842 = vld [vmem:[%s589 + $0x28] sm:$0xf]
  %v843 = vld [vmem:[%s589 + $0x2c] sm:$0xf]
  %v844 = vld [vmem:[%s589 + $0x30] sm:$0xf]
  %v845 = vld [vmem:[%s589 + $0x34] sm:$0xf]
  %v846 = vld [vmem:[%s589 + $0x38] sm:$0xf]
  %v847 = vld [vmem:[%s589 + $0x3c] sm:$0xf]
  %v848 = vld [vmem:[%s589 + $0x40] sm:$0xf]
  %v849 = vld [vmem:[%s589 + $0x44] sm:$0xf]
  %v850 = vld [vmem:[%s589 + $0x48] sm:$0xf]
  %v851 = vld [vmem:[%s589 + $0x4c] sm:$0xf]
  %v852 = vld [vmem:[%s589 + $0x50] sm:$0xf]
  %v853 = vld [vmem:[%s589 + $0x54] sm:$0xf]
  %v872 = vunpack.c.l.b16 %v836
  %v873 = vunpack.c.l.b16 %v837
  %v874 = vunpack.c.l.b16 %v838
  %v875 = vunpack.c.l.b16 %v839
  %v876 = vunpack.c.l.b16 %v840
  %v877 = vunpack.c.l.b16 %v841
  %v878 = vunpack.c.l.b16 %v842
  %v879 = vunpack.c.l.b16 %v843
  %v880 = vunpack.c.l.b16 %v844
  %v881 = vunpack.c.l.b16 %v845
  %v882 = vunpack.c.l.b16 %v846
  %v883 = vunpack.c.l.b16 %v847
  %v884 = vunpack.c.l.b16 %v848
  %v885 = vunpack.c.l.b16 %v849
  %v886 = vunpack.c.l.b16 %v850
  %v887 = vunpack.c.l.b16 %v851
  %v888 = vunpack.c.l.b16 %v852
  %v889 = vunpack.c.l.b16 %v853
  %v890 = vpack.c.b16 %v873, %v872
  %v891 = vpack.c.b16 %v875, %v874
  %v892 = vpack.c.b16 %v877, %v876
  %v893 = vpack.c.b16 %v879, %v878
  %v894 = vpack.c.b16 %v881, %v880
  %v895 = vpack.c.b16 %v883, %v882
  %v896 = vpack.c.b16 %v885, %v884
  %v897 = vpack.c.b16 %v887, %v886
  %v898 = vpack.c.b16 %v889, %v888
  %908 = vmatprep.subr.bf16.mxu0 0
  %909 = vmatpush1.bf16.msra.mxu0 %v897
  %910 = vmatprep.subr.bf16.mxu0 0
  %911 = vmatpush1.bf16.msra.mxu0 %v896
  %912 = vmatprep.subr.bf16.mxu0 0
  %913 = vmatpush1.bf16.msra.mxu0 %v895
  %914 = vmatprep.subr.bf16.mxu0 0
  %915 = vmatpush1.bf16.msra.mxu0 %v894
  %916 = vmatprep.subr.bf16.mxu0 0
  %917 = vmatpush1.bf16.msra.mxu0 %v893
  %918 = vmatprep.subr.bf16.mxu0 0
  %919 = vmatpush1.bf16.msra.mxu0 %v892
  %920 = vmatprep.subr.bf16.mxu0 0
  %921 = vmatpush1.bf16.msra.mxu0 %v891
  %922 = vmatprep.subr.bf16.mxu0 0
  %923 = vmatpush1.bf16.msra.mxu0 %v890
  %924 = vmatprep.subr.bf16.mxu0 0
  %925 = vmatpush2.bf16.msra.mxu0 0
  %926 = vmatprep.subr.bf16.mxu0 0
  %927 = vmatpush2.bf16.msra.mxu0 0
  %928 = vmatprep.subr.bf16.mxu0 0
  %929 = vmatpush2.bf16.msra.mxu0 0
  %930 = vmatprep.subr.bf16.mxu0 0
  %931 = vmatpush2.bf16.msra.mxu0 0
  %932 = vmatprep.subr.bf16.mxu0 0
  %933 = vmatpush2.bf16.msra.mxu0 0
  %934 = vmatprep.subr.bf16.mxu0 0
  %935 = vmatpush2.bf16.msra.mxu0 0
  %936 = vmatprep.subr.bf16.mxu0 0
  %937 = vmatpush2.bf16.msra.mxu0 0
  %938 = vmatprep.subr.bf16.mxu0 0
  %939 = vmatpush2.bf16.msra.mxu0 %v898
  %940 = vmatprep.mubr.bf16.mxu0 %v135
  %941 = vmatmul.mubr.bf16.gmra.mxu0 %v73
  %v942 = vpop.f32.mrf.mxu0
  %v943 = vadd.f32 %v44, %v942
  %v944 = vpop.f32.mrf.mxu0
  %v945 = vpop.f32.mrf.mxu0
  %v946 = vadd.f32 %v49, %v945
  %v947 = vpop.f32.mrf.mxu0
  %948 = vmatprep.mubr.bf16.mxu0 %v138
  %949 = vmatmul.mubr.bf16.gmra.mxu0 %v75
  %v950 = vpop.f32.mrf.mxu0
  %v951 = vadd.f32 %v54, %v950
  %v952 = vpop.f32.mrf.mxu0
  %v953 = vpop.f32.mrf.mxu0
  %v954 = vadd.f32 %v59, %v953
  %v955 = vpop.f32.mrf.mxu0
  %956 = vdwg.mxu0
  %v957 = vmax.f32 %v832, %v943
  %v958 = vmax.f32 %v833, %v946
  %v959 = vmax.f32 %v834, %v951
  %v960 = vmax.f32 %v835, %v954
  %v961 = vld [vmem:[%s589 + $0x18] sm:$0xf]
  %v962 = vld [vmem:[%s589 + $0x1c] sm:$0xf]
  %v963 = vld [vmem:[%s589 + $0x20] sm:$0xf]
  %v964 = vld [vmem:[%s589 + $0x24] sm:$0xf]
  %v965 = vld [vmem:[%s589 + $0x28] sm:$0xf]
  %v966 = vld [vmem:[%s589 + $0x2c] sm:$0xf]
  %v967 = vld [vmem:[%s589 + $0x30] sm:$0xf]
  %v968 = vld [vmem:[%s589 + $0x34] sm:$0xf]
  %v969 = vld [vmem:[%s589 + $0x38] sm:$0xf]
  %v970 = vld [vmem:[%s589 + $0x3c] sm:$0xf]
  %v971 = vld [vmem:[%s589 + $0x40] sm:$0xf]
  %v972 = vld [vmem:[%s589 + $0x44] sm:$0xf]
  %v973 = vld [vmem:[%s589 + $0x48] sm:$0xf]
  %v974 = vld [vmem:[%s589 + $0x4c] sm:$0xf]
  %v975 = vld [vmem:[%s589 + $0x50] sm:$0xf]
  %v976 = vld [vmem:[%s589 + $0x54] sm:$0xf]
  %v977 = vld [vmem:[%s589 + $0x58] sm:$0xf]
  %v978 = vld [vmem:[%s589 + $0x5c] sm:$0xf]
  %v997 = vunpack.c.l.b16 %v961
  %v998 = vunpack.c.l.b16 %v962
  %v999 = vunpack.c.l.b16 %v963
  %v1000 = vunpack.c.l.b16 %v964
  %v1001 = vunpack.c.l.b16 %v965
  %v1002 = vunpack.c.l.b16 %v966
  %v1003 = vunpack.c.l.b16 %v967
  %v1004 = vunpack.c.l.b16 %v968
  %v1005 = vunpack.c.l.b16 %v969
  %v1006 = vunpack.c.l.b16 %v970
  %v1007 = vunpack.c.l.b16 %v971
  %v1008 = vunpack.c.l.b16 %v972
  %v1009 = vunpack.c.l.b16 %v973
  %v1010 = vunpack.c.l.b16 %v974
  %v1011 = vunpack.c.l.b16 %v975
  %v1012 = vunpack.c.l.b16 %v976
  %v1013 = vunpack.c.l.b16 %v977
  %v1014 = vunpack.c.l.b16 %v978
  %v1015 = vpack.c.b16 %v998, %v997
  %v1016 = vpack.c.b16 %v1000, %v999
  %v1017 = vpack.c.b16 %v1002, %v1001
  %v1018 = vpack.c.b16 %v1004, %v1003
  %v1019 = vpack.c.b16 %v1006, %v1005
  %v1020 = vpack.c.b16 %v1008, %v1007
  %v1021 = vpack.c.b16 %v1010, %v1009
  %v1022 = vpack.c.b16 %v1012, %v1011
  %v1023 = vpack.c.b16 %v1014, %v1013
  %1033 = vmatprep.subr.bf16.mxu0 0
  %1034 = vmatpush1.bf16.msra.mxu0 %v1022
  %1035 = vmatprep.subr.bf16.mxu0 0
  %1036 = vmatpush1.bf16.msra.mxu0 %v1021
  %1037 = vmatprep.subr.bf16.mxu0 0
  %1038 = vmatpush1.bf16.msra.mxu0 %v1020
  %1039 = vmatprep.subr.bf16.mxu0 0
  %1040 = vmatpush1.bf16.msra.mxu0 %v1019
  %1041 = vmatprep.subr.bf16.mxu0 0
  %1042 = vmatpush1.bf16.msra.mxu0 %v1018
  %1043 = vmatprep.subr.bf16.mxu0 0
  %1044 = vmatpush1.bf16.msra.mxu0 %v1017
  %1045 = vmatprep.subr.bf16.mxu0 0
  %1046 = vmatpush1.bf16.msra.mxu0 %v1016
  %1047 = vmatprep.subr.bf16.mxu0 0
  %1048 = vmatpush1.bf16.msra.mxu0 %v1015
  %1049 = vmatprep.subr.bf16.mxu0 0
  %1050 = vmatpush2.bf16.msra.mxu0 0
  %1051 = vmatprep.subr.bf16.mxu0 0
  %1052 = vmatpush2.bf16.msra.mxu0 0
  %1053 = vmatprep.subr.bf16.mxu0 0
  %1054 = vmatpush2.bf16.msra.mxu0 0
  %1055 = vmatprep.subr.bf16.mxu0 0
  %1056 = vmatpush2.bf16.msra.mxu0 0
  %1057 = vmatprep.subr.bf16.mxu0 0
  %1058 = vmatpush2.bf16.msra.mxu0 0
  %1059 = vmatprep.subr.bf16.mxu0 0
  %1060 = vmatpush2.bf16.msra.mxu0 0
  %1061 = vmatprep.subr.bf16.mxu0 0
  %1062 = vmatpush2.bf16.msra.mxu0 0
  %1063 = vmatprep.subr.bf16.mxu0 0
  %1064 = vmatpush2.bf16.msra.mxu0 %v1023
  %1065 = vmatprep.mubr.bf16.mxu0 %v135
  %1066 = vmatmul.mubr.bf16.gmra.mxu0 %v73
  %v1067 = vpop.f32.mrf.mxu0
  %v1068 = vadd.f32 %v44, %v1067
  %v1069 = vpop.f32.mrf.mxu0
  %v1070 = vpop.f32.mrf.mxu0
  %v1071 = vadd.f32 %v49, %v1070
  %v1072 = vpop.f32.mrf.mxu0
  %1073 = vmatprep.mubr.bf16.mxu0 %v138
  %1074 = vmatmul.mubr.bf16.gmra.mxu0 %v75
  %v1075 = vpop.f32.mrf.mxu0
  %v1076 = vadd.f32 %v54, %v1075
  %v1077 = vpop.f32.mrf.mxu0
  %v1078 = vpop.f32.mrf.mxu0
  %v1079 = vadd.f32 %v59, %v1078
  %v1080 = vpop.f32.mrf.mxu0
  %1081 = vdwg.mxu0
  %v1082 = vmax.f32 %v957, %v1068
  %v1083 = vmax.f32 %v958, %v1071
  %v1084 = vmax.f32 %v959, %v1076
  %v1085 = vmax.f32 %v960, %v1079
  %v1086 = vmax.f32 %v1082, 0.0
  %v1087 = vmax.f32 %v1083, 0.0
  %v1088 = vmax.f32 %v1084, 0.0
  %v1089 = vmax.f32 %v1085, 0.0
  %v1090 = vpack.c.bf16 %v1087, %v1086
  %v1091 = vpack.c.bf16 %v1089, %v1088
  %v1094 = vunpack.c.l.b16 %v1090
  %v1095 = vunpack.c.h.b16 %v1090
  %v1096 = vunpack.c.l.b16 %v1091
  %v1097 = vunpack.c.h.b16 %v1091
  %v1098 = vpack.c.b16 %v1094, %v1094
  %v1099 = vpack.c.b16 %v1095, %v1095
  %v1100 = vpack.c.b16 %v1096, %v1096
  %v1101 = vpack.c.b16 %v1097, %v1097
  %s1106 = scalar_lea.vmem %s3, 16
  %1107 = vst.msk [vmem:[%s1106] sm:$0xf] %vm584, %v1098
  %1108 = vst.msk [vmem:[%s1106 + $0x4] sm:$0xf] %vm584, %v1099
  %1109 = vst.msk [vmem:[%s1106 + $0x8] sm:$0xf] %vm584, %v1100
  %1110 = vst.msk [vmem:[%s1106 + $0xc] sm:$0xf] %vm584, %v1101
  // Predicated region
  $region14: #{cnn1d_forward.4} parent=0 // pred_check
    _
  $region15: #{cnn1d_forward.4} parent=0 // pred_check_branch
    %1112 = sbr.rel (0) target = $region17
  $region16: #{cnn1d_forward.4} parent=0 // pred_region
    _
  $region17: #{cnn1d_forward.4} parent=0 // pred_fallthru
    _
  // Predicated region
  $region18: #{cnn1d_forward.4} parent=0 // pred_check
    _
  $region19: #{cnn1d_forward.4} parent=0 // pred_check_branch
    %1114 = sbr.rel (0) target = $region21
  $region20: #{cnn1d_forward.4} parent=0 // pred_region
    _
  $region21: #{cnn1d_forward.4} parent=0 // pred_fallthru
    _

</llo_original>
